<compile_context>
chip_gen: v7x
topology: tpu7x:2x2x1
jax: 0.10.0
libtpu: 0.0.40
codegen_flags: <defaults>
</compile_context>

<pallas_src>
import functools

import jax
import jax.numpy as jnp
from jax.experimental import pallas as pl
from jax.experimental.pallas import tpu as pltpu


def _round_up(a, m):
    return (a + m - 1) // m * m


# ----------------------------------------------------------------------------
# Pallas kernels
# ----------------------------------------------------------------------------
def _pconv_kernel(x_ref, w1_ref, b1_ref, w2_ref, b2_ref, o_ref):
    """pconv tile, transposed form (channels x time), num_spks rows per step.

    x_ref : (S, F, TT)      bf16 input rows of one batch element
    w1_ref: (4F, F)         Linear(F -> 4F) transposed, bf16 (value rows then gate rows)
    b1_ref: (4F, 1)         f32 bias column
    w2_ref: (N, 2F)         Linear(2F -> N) transposed, bf16
    b2_ref: (N, 1)          f32 bias column
    o_ref : (S, 1, N, TT)   output tile, already in (S, B, N, T) layout
    """
    hd = w1_ref.shape[0] // 2
    num_spks = x_ref.shape[0]
    for s in range(num_spks):                                  # static unroll
        x = x_ref[s]                                           # (F, TT)
        h = jnp.dot(w1_ref[...], x,
                    preferred_element_type=jnp.float32) + b1_ref[...]   # (4F, TT)
        hv = h[:hd]                                            # sublane-aligned slices
        hg = h[hd:]
        gate = pl.reciprocal(1.0 + jnp.exp(-hg), approx=True)  # sigmoid via EUP vrcp
        g = (hv * gate).astype(w2_ref.dtype)                   # (2F, TT) bf16
        y = jnp.dot(w2_ref[...], g,
                    preferred_element_type=jnp.float32) + b2_ref[...]   # (N, TT)
        o_ref[s, 0] = y.astype(o_ref.dtype)


def _pconv_mask_kernel(x_ref, ref_ref, w1_ref, b1_ref, w2_ref, b2_ref, o_ref):
    """Same as _pconv_kernel but fuses the masking branch: relu(y) * ref.

    ref_ref: (1, N, TT) — one ref tile shared by all num_spks rows of the step.
    """
    hd = w1_ref.shape[0] // 2
    num_spks = x_ref.shape[0]
    r = ref_ref[0].astype(jnp.float32)                         # loaded once per step
    for s in range(num_spks):
        x = x_ref[s]                                           # (F, TT)
        h = jnp.dot(w1_ref[...], x,
                    preferred_element_type=jnp.float32) + b1_ref[...]
        hv = h[:hd]
        hg = h[hd:]
        gate = pl.reciprocal(1.0 + jnp.exp(-hg), approx=True)
        g = (hv * gate).astype(w2_ref.dtype)
        y = jnp.dot(w2_ref[...], g,
                    preferred_element_type=jnp.float32) + b2_ref[...]
        y = jnp.maximum(y, 0.0) * r                            # fused mask
        o_ref[s, 0] = y.astype(o_ref.dtype)


# ----------------------------------------------------------------------------
# Parameter preparation (transpose + dtype, hoisted: call once, reuse)
# ----------------------------------------------------------------------------
def prepare_params(params, compute_dtype=jnp.bfloat16):
    w1, b1, w2, b2 = params["w1"], params["b1"], params["w2"], params["b2"]
    return {
        "w1_t": jnp.asarray(w1.T, compute_dtype),               # (4F, F)
        "b1c": jnp.asarray(b1.reshape(-1, 1), jnp.float32),     # (4F, 1)
        "w2_t": jnp.asarray(w2.T, compute_dtype),               # (N, 2F)
        "b2c": jnp.asarray(b2.reshape(-1, 1), jnp.float32),     # (N, 1)
    }


# ----------------------------------------------------------------------------
# Wrapper: full OutputLayer.forward semantics
# ----------------------------------------------------------------------------
def output_layer_forward(x, ref, prepared, *, num_spks, masking=False,
                         out_dtype=None, time_tile=2048):
    """
    Args:
      x       : (B*S, F, T_x)  separated audio features (T_x >= T)
      ref     : (B,  F, T)     mixture audio features (defines output T)
      prepared: dict from prepare_params()
    Returns:
      (S, B, N, T)
    """
    B_S, F, T_x = x.shape
    B, F_ref, T = ref.shape
    assert F_ref == F and B_S == B * num_spks and T_x >= T

    w1_t, b1c, w2_t, b2c = (prepared["w1_t"], prepared["b1c"],
                            prepared["w2_t"], prepared["b2c"])
    N = w2_t.shape[0]
    compute_dtype = w1_t.dtype
    if out_dtype is None:
        out_dtype = compute_dtype

    # Lane-dense time tile.  Keep it large to amortize the per-step overhead,
    # but keep >= ~8 grid steps so v7x's two TensorCores both get work.
    TT = min(time_tile, _round_up(T, 128))
    while TT > 512 and B * (-(-T // TT)) < 8:
        TT = _round_up(TT // 2, 128)
    num_t = -(-T // TT)

    x_c = x.astype(compute_dtype)     # no-op if x already arrives in bf16

    # One grid step = all num_spks rows of one batch element, one time tile.
    x_spec = pl.BlockSpec((num_spks, F, TT), lambda b, t: (b, 0, t))
    # Output written directly in (S, B, N, T) layout; last tile is a masked
    # partial write when T % TT != 0.
    o_spec = pl.BlockSpec((num_spks, 1, N, TT), lambda b, t: (0, b, 0, t))

    def const_spec(arr):
        return pl.BlockSpec(arr.shape, lambda b, t: (0, 0))

    weight_args = (w1_t, b1c, w2_t, b2c)
    weight_specs = [const_spec(a) for a in weight_args]

    out_shape = jax.ShapeDtypeStruct((num_spks, B, N, T), out_dtype)
    cparams = pltpu.CompilerParams(
        dimension_semantics=("parallel", "parallel"))

    if masking:
        # PyTorch: ref.expand(S,B,N,T).transpose(0,1).view(B*S,N,T)
        #          == all speakers of batch b use ref[b].  (requires N == F)
        assert N == F, "masking path requires out_channels == in_channels"
        ref_c = ref.astype(compute_dtype)
        ref_spec = pl.BlockSpec((1, F, TT), lambda b, t: (b, 0, t))
        y = pl.pallas_call(
            _pconv_mask_kernel,
            out_shape=out_shape,
            grid_spec=pltpu.PrefetchScalarGridSpec(
                num_scalar_prefetch=0,
                grid=(B, num_t),
                in_specs=[x_spec, ref_spec] + weight_specs,
                out_specs=o_spec),
            compiler_params=cparams,
        )(x_c, ref_c, *weight_args)
    else:
        y = pl.pallas_call(
            _pconv_kernel,
            out_shape=out_shape,
            grid_spec=pltpu.PrefetchScalarGridSpec(
                num_scalar_prefetch=0,
                grid=(B, num_t),
                in_specs=[x_spec] + weight_specs,
                out_specs=o_spec),
            compiler_params=cparams,
        )(x_c, *weight_args)

    # Already (S, B, N, T): no wrapper transpose / slice passes.
    return y


# ----------------------------------------------------------------------------
# Pure-JAX reference (mirrors the PyTorch forward, f32 math)
# ----------------------------------------------------------------------------
def output_layer_reference(x, ref, params, *, num_spks, masking=False):
    w1 = params["w1"].astype(jnp.float32)
    b1 = params["b1"].astype(jnp.float32)
    w2 = params["w2"].astype(jnp.float32)
    b2 = params["b2"].astype(jnp.float32)
    T = ref.shape[-1]
    xt = jnp.transpose(x[..., :T].astype(jnp.float32), (0, 2, 1))
    h = xt @ w1 + b1
    hd = h.shape[-1] // 2
    g = h[..., :hd] * jax.nn.sigmoid(h[..., hd:])
    y = g @ w2 + b2
    y = jnp.transpose(y, (0, 2, 1))                      # (B*S, N, T)
    if masking:
        ref_exp = jnp.repeat(ref.astype(jnp.float32), num_spks, axis=0)
        y = jax.nn.relu(y) * ref_exp
    B = x.shape[0] // num_spks
    y = y.reshape(B, num_spks, y.shape[1], T)
    return jnp.transpose(y, (1, 0, 2, 3))


# ----------------------------------------------------------------------------
# Deterministic parameter init (matches shapes of the nn.Module __init__)
# ----------------------------------------------------------------------------
def init_params(key, in_channels, out_channels):
    hidden_dim = 2 * in_channels
    k1, k2, k3, k4 = jax.random.split(key, 4)
    # Stored pre-transposed relative to torch.nn.Linear.weight: y = x @ w + b
    w1 = jax.random.normal(k1, (in_channels, 2 * hidden_dim), jnp.float32) * 0.05
    b1 = jax.random.normal(k2, (2 * hidden_dim,), jnp.float32) * 0.01
    w2 = jax.random.normal(k3, (hidden_dim, out_channels), jnp.float32) * 0.05
    b2 = jax.random.normal(k4, (out_channels,), jnp.float32) * 0.01
    return {"w1": w1, "b1": b1, "w2": w2, "b2": b2}


if __name__ == "__main__":
    # Small shapes consistent with the forward:
    #   x:   (B*S, F, T_x)   separated features (T_x longer than ref's T)
    #   ref: (B,   F, T)     mixture features (T not a multiple of 128)
    B, S = 2, 2               # num_spks = 2
    F_in = 64                 # in_channels
    N_out = 64                # out_channels (== F_in so masking path is valid)
    T_ref, T_x = 192, 256

    key = jax.random.PRNGKey(0)
    kx, kr, kp = jax.random.split(key, 3)
    x = jax.random.normal(kx, (B * S, F_in, T_x), jnp.float32).astype(jnp.bfloat16)
    ref = jax.random.normal(kr, (B, F_in, T_ref), jnp.float32).astype(jnp.bfloat16)
    params = init_params(kp, F_in, N_out)

    # Weights transposed / cast exactly once (hoisted out of the forward).
    pp = prepare_params(params)

    # Reference uses bf16-rounded weights (same values the kernel consumes),
    # with f32 math, so the comparison isolates kernel-side rounding only.
    params_rt = {
        "w1": params["w1"].astype(jnp.bfloat16).astype(jnp.float32),
        "b1": params["b1"],
        "w2": params["w2"].astype(jnp.bfloat16).astype(jnp.float32),
        "b2": params["b2"],
    }

    # Default module configuration (masking=False), single ragged time tile.
    fwd = jax.jit(functools.partial(output_layer_forward,
                                    num_spks=S, masking=False))
    out = jax.block_until_ready(fwd(x, ref, pp))
    expected = output_layer_reference(x, ref, params_rt, num_spks=S,
                                      masking=False)
    assert out.shape == (S, B, N_out, T_ref), out.shape
    assert jnp.allclose(out.astype(jnp.float32), expected,
                        atol=2e-2, rtol=2e-2)

    # Masking branch; small time tile forces multiple time tiles plus a ragged
    # last tile (masked partial write-back) and exercises ref sharing across
    # the num_spks rows of each grid step.
    fwd_m = jax.jit(functools.partial(output_layer_forward,
                                      num_spks=S, masking=True, time_tile=128))
    out_m = jax.block_until_ready(fwd_m(x, ref, pp))
    expected_m = output_layer_reference(x, ref, params_rt, num_spks=S,
                                        masking=True)
    assert out_m.shape == (S, B, N_out, T_ref), out_m.shape
    assert jnp.allclose(out_m.astype(jnp.float32), expected_m,
                        atol=2e-2, rtol=2e-2)

    print("KERNEL_OK")
</pallas_src>

<mosaic_0001>
module attributes {stable_mosaic.version = 11 : i64} {
  func.func @_pconv_kernel(%arg0: i32, %arg1: i32, %arg2: memref<2x64x256xbf16, #tpu.memory_space<vmem>>, %arg3: memref<256x64xbf16, #tpu.memory_space<vmem>>, %arg4: memref<256x1xf32, #tpu.memory_space<vmem>>, %arg5: memref<64x128xbf16, #tpu.memory_space<vmem>>, %arg6: memref<64x1xf32, #tpu.memory_space<vmem>>, %arg7: memref<2x1x64x256xbf16, #tpu.memory_space<vmem>>) attributes {dimension_semantics = [#tpu.dimension_semantics<parallel>, #tpu.dimension_semantics<parallel>], iteration_bounds = array<i64: 2, 1>, scalar_prefetch = 0 : i64, scratch_operands = 0 : i64, tpu.core_type = #tpu.core_type<tc>, window_params = [{transform_indices = @transform_0, window_bounds = array<i64: 2, 64, 256>}, {pipeline_mode = #tpu.pipeline_mode<synchronous>, transform_indices = @transform_1, window_bounds = array<i64: 256, 64>}, {pipeline_mode = #tpu.pipeline_mode<synchronous>, transform_indices = @transform_2, window_bounds = array<i64: 256, 1>}, {pipeline_mode = #tpu.pipeline_mode<synchronous>, transform_indices = @transform_3, window_bounds = array<i64: 64, 128>}, {pipeline_mode = #tpu.pipeline_mode<synchronous>, transform_indices = @transform_4, window_bounds = array<i64: 64, 1>}, {transform_indices = @transform_5, window_bounds = array<i64: 2, 1, 64, 256>}]} {
    %c0 = arith.constant 0 : index
    %c0_0 = arith.constant 0 : index
    %c0_1 = arith.constant 0 : index
    %0 = vector.load %arg2[%c0, %c0_0, %c0_1] : memref<2x64x256xbf16, #tpu.memory_space<vmem>>, vector<1x64x256xbf16>
    %1 = vector.shape_cast %0 : vector<1x64x256xbf16> to vector<64x256xbf16>
    %c0_2 = arith.constant 0 : index
    %c0_3 = arith.constant 0 : index
    %2 = vector.load %arg3[%c0_2, %c0_3] : memref<256x64xbf16, #tpu.memory_space<vmem>>, vector<256x64xbf16>
    %cst = arith.constant dense<0.000000e+00> : vector<256x256xf32>
    %3 = tpu.matmul %2, %1, %cst {dimension_numbers = #tpu.dot_dimension_numbers<[1], [0], [0], [1], [0, 0, 1, 1], [], []>} : vector<256x64xbf16>, vector<64x256xbf16>, vector<256x256xf32> -> vector<256x256xf32>
    %c0_4 = arith.constant 0 : index
    %c0_5 = arith.constant 0 : index
    %4 = vector.load %arg4[%c0_4, %c0_5] : memref<256x1xf32, #tpu.memory_space<vmem>>, vector<256x1xf32>
    %5 = vector.broadcast %4 : vector<256x1xf32> to vector<256x256xf32>
    %6 = arith.addf %3, %5 : vector<256x256xf32>
    %7 = vector.extract_strided_slice %6 {offsets = [0, 0], sizes = [128, 256], strides = [1, 1]} : vector<256x256xf32> to vector<128x256xf32>
    %8 = vector.extract_strided_slice %6 {offsets = [128, 0], sizes = [128, 256], strides = [1, 1]} : vector<256x256xf32> to vector<128x256xf32>
    %cst_6 = arith.constant 0.000000e+00 : f32
    %9 = vector.broadcast %cst_6 : f32 to vector<128x256xf32>
    %10 = arith.subf %9, %8 : vector<128x256xf32>
    %11 = math.exp %10 : vector<128x256xf32>
    %cst_7 = arith.constant 1.000000e+00 : f32
    %12 = vector.broadcast %cst_7 : f32 to vector<128x256xf32>
    %13 = arith.addf %12, %11 : vector<128x256xf32>
    %14 = tpu.reciprocal %13 {approx = true} : vector<128x256xf32> -> vector<128x256xf32>
    %15 = arith.mulf %7, %14 : vector<128x256xf32>
    %16 = arith.truncf %15 : vector<128x256xf32> to vector<128x256xbf16>
    %c0_8 = arith.constant 0 : index
    %c0_9 = arith.constant 0 : index
    %17 = vector.load %arg5[%c0_8, %c0_9] : memref<64x128xbf16, #tpu.memory_space<vmem>>, vector<64x128xbf16>
    %cst_10 = arith.constant dense<0.000000e+00> : vector<64x256xf32>
    %18 = tpu.matmul %17, %16, %cst_10 {dimension_numbers = #tpu.dot_dimension_numbers<[1], [0], [0], [1], [0, 0, 1, 1], [], []>} : vector<64x128xbf16>, vector<128x256xbf16>, vector<64x256xf32> -> vector<64x256xf32>
    %c0_11 = arith.constant 0 : index
    %c0_12 = arith.constant 0 : index
    %19 = vector.load %arg6[%c0_11, %c0_12] : memref<64x1xf32, #tpu.memory_space<vmem>>, vector<64x1xf32>
    %20 = vector.broadcast %19 : vector<64x1xf32> to vector<64x256xf32>
    %21 = arith.addf %18, %20 : vector<64x256xf32>
    %22 = arith.truncf %21 : vector<64x256xf32> to vector<64x256xbf16>
    %c0_13 = arith.constant 0 : index
    %c0_14 = arith.constant 0 : index
    %c0_15 = arith.constant 0 : index
    %c0_16 = arith.constant 0 : index
    %23 = vector.load %arg7[%c0_13, %c0_14, %c0_15, %c0_16] : memref<2x1x64x256xbf16, #tpu.memory_space<vmem>>, vector<1x1x64x256xbf16>
    %24 = vector.shape_cast %23 : vector<1x1x64x256xbf16> to vector<64x256xbf16>
    %25 = vector.shape_cast %22 : vector<64x256xbf16> to vector<1x1x64x256xbf16>
    tpu.vector_store %arg7[%c0_13, %c0_14, %c0_15, %c0_16], %25 {strides = array<i32>} : memref<2x1x64x256xbf16, #tpu.memory_space<vmem>>, vector<1x1x64x256xbf16>,
    %c1 = arith.constant 1 : index
    %c0_17 = arith.constant 0 : index
    %c0_18 = arith.constant 0 : index
    %26 = vector.load %arg2[%c1, %c0_17, %c0_18] : memref<2x64x256xbf16, #tpu.memory_space<vmem>>, vector<1x64x256xbf16>
    %27 = vector.shape_cast %26 : vector<1x64x256xbf16> to vector<64x256xbf16>
    %c0_19 = arith.constant 0 : index
    %c0_20 = arith.constant 0 : index
    %28 = vector.load %arg3[%c0_19, %c0_20] : memref<256x64xbf16, #tpu.memory_space<vmem>>, vector<256x64xbf16>
    %cst_21 = arith.constant dense<0.000000e+00> : vector<256x256xf32>
    %29 = tpu.matmul %28, %27, %cst_21 {dimension_numbers = #tpu.dot_dimension_numbers<[1], [0], [0], [1], [0, 0, 1, 1], [], []>} : vector<256x64xbf16>, vector<64x256xbf16>, vector<256x256xf32> -> vector<256x256xf32>
    %c0_22 = arith.constant 0 : index
    %c0_23 = arith.constant 0 : index
    %30 = vector.load %arg4[%c0_22, %c0_23] : memref<256x1xf32, #tpu.memory_space<vmem>>, vector<256x1xf32>
    %31 = vector.broadcast %30 : vector<256x1xf32> to vector<256x256xf32>
    %32 = arith.addf %29, %31 : vector<256x256xf32>
    %33 = vector.extract_strided_slice %32 {offsets = [0, 0], sizes = [128, 256], strides = [1, 1]} : vector<256x256xf32> to vector<128x256xf32>
    %34 = vector.extract_strided_slice %32 {offsets = [128, 0], sizes = [128, 256], strides = [1, 1]} : vector<256x256xf32> to vector<128x256xf32>
    %cst_24 = arith.constant 0.000000e+00 : f32
    %35 = vector.broadcast %cst_24 : f32 to vector<128x256xf32>
    %36 = arith.subf %35, %34 : vector<128x256xf32>
    %37 = math.exp %36 : vector<128x256xf32>
    %cst_25 = arith.constant 1.000000e+00 : f32
    %38 = vector.broadcast %cst_25 : f32 to vector<128x256xf32>
    %39 = arith.addf %38, %37 : vector<128x256xf32>
    %40 = tpu.reciprocal %39 {approx = true} : vector<128x256xf32> -> vector<128x256xf32>
    %41 = arith.mulf %33, %40 : vector<128x256xf32>
    %42 = arith.truncf %41 : vector<128x256xf32> to vector<128x256xbf16>
    %c0_26 = arith.constant 0 : index
    %c0_27 = arith.constant 0 : index
    %43 = vector.load %arg5[%c0_26, %c0_27] : memref<64x128xbf16, #tpu.memory_space<vmem>>, vector<64x128xbf16>
    %cst_28 = arith.constant dense<0.000000e+00> : vector<64x256xf32>
    %44 = tpu.matmul %43, %42, %cst_28 {dimension_numbers = #tpu.dot_dimension_numbers<[1], [0], [0], [1], [0, 0, 1, 1], [], []>} : vector<64x128xbf16>, vector<128x256xbf16>, vector<64x256xf32> -> vector<64x256xf32>
    %c0_29 = arith.constant 0 : index
    %c0_30 = arith.constant 0 : index
    %45 = vector.load %arg6[%c0_29, %c0_30] : memref<64x1xf32, #tpu.memory_space<vmem>>, vector<64x1xf32>
    %46 = vector.broadcast %45 : vector<64x1xf32> to vector<64x256xf32>
    %47 = arith.addf %44, %46 : vector<64x256xf32>
    %48 = arith.truncf %47 : vector<64x256xf32> to vector<64x256xbf16>
    %c1_31 = arith.constant 1 : index
    %c0_32 = arith.constant 0 : index
    %c0_33 = arith.constant 0 : index
    %c0_34 = arith.constant 0 : index
    %49 = vector.load %arg7[%c1_31, %c0_32, %c0_33, %c0_34] : memref<2x1x64x256xbf16, #tpu.memory_space<vmem>>, vector<1x1x64x256xbf16>
    %50 = vector.shape_cast %49 : vector<1x1x64x256xbf16> to vector<64x256xbf16>
    %51 = vector.shape_cast %48 : vector<64x256xbf16> to vector<1x1x64x256xbf16>
    tpu.vector_store %arg7[%c1_31, %c0_32, %c0_33, %c0_34], %51 {strides = array<i32>} : memref<2x1x64x256xbf16, #tpu.memory_space<vmem>>, vector<1x1x64x256xbf16>,
    return
  }
  func.func @transform_0(%arg0: i32, %arg1: i32) -> (i32, i32, i32) {
    %c0_i32 = arith.constant 0 : i32
    %c0_i32_0 = arith.constant 0 : i32
    return %arg0, %c0_i32, %arg1 : i32, i32, i32
  }
  func.func @transform_1(%arg0: i32, %arg1: i32) -> (i32, i32) {
    %c0_i32 = arith.constant 0 : i32
    %c0_i32_0 = arith.constant 0 : i32
    %c0_i32_1 = arith.constant 0 : i32
    return %c0_i32, %c0_i32_0 : i32, i32
  }
  func.func @transform_2(%arg0: i32, %arg1: i32) -> (i32, i32) {
    %c0_i32 = arith.constant 0 : i32
    %c0_i32_0 = arith.constant 0 : i32
    %c0_i32_1 = arith.constant 0 : i32
    return %c0_i32, %c0_i32_0 : i32, i32
  }
  func.func @transform_3(%arg0: i32, %arg1: i32) -> (i32, i32) {
    %c0_i32 = arith.constant 0 : i32
    %c0_i32_0 = arith.constant 0 : i32
    %c0_i32_1 = arith.constant 0 : i32
    return %c0_i32, %c0_i32_0 : i32, i32
  }
  func.func @transform_4(%arg0: i32, %arg1: i32) -> (i32, i32) {
    %c0_i32 = arith.constant 0 : i32
    %c0_i32_0 = arith.constant 0 : i32
    %c0_i32_1 = arith.constant 0 : i32
    return %c0_i32, %c0_i32_0 : i32, i32
  }
  func.func @transform_5(%arg0: i32, %arg1: i32) -> (i32, i32, i32, i32) {
    %c0_i32 = arith.constant 0 : i32
    %c0_i32_0 = arith.constant 0 : i32
    %c0_i32_1 = arith.constant 0 : i32
    return %c0_i32, %arg0, %c0_i32_0, %arg1 : i32, i32, i32, i32
  }
}

</mosaic_0001>

<llo_original>
// kernel: output_layer_forward.1
$region0: #{output_layer_forward.1}
  #allocation0 [shape = 'u32[]', space=smem, size = 0x4, offset = 0x4, fixed_abs, tag = 'smem constant byte address 0x4 - core index']
  #allocation1 [shape = 'u32[144,128]{1,0:T(1,128)}', space=vmem, size = 0x12000, scoped, tag = 'internal scratch']
  #allocation4 [shape = 's32[]', space=sflag, size = 0x4, offset = 0, fixed_abs, tag = 'sflag constant byte address 0x0 - dummy sync flag']
  %s0 = inlined_call_operand.vmem [shape: bf16[4,64,256], index: 0, kind: input, shape index: {}]
  %s1 = inlined_call_operand.vmem [shape: bf16[256,64], index: 1, kind: input, shape index: {}]
  %s2 = inlined_call_operand.vmem [shape: f32[256,1], index: 2, kind: input, shape index: {}]
  %s3 = inlined_call_operand.vmem [shape: bf16[64,128], index: 3, kind: input, shape index: {}]
  %s4 = inlined_call_operand.vmem [shape: f32[64,1], index: 4, kind: input, shape index: {}]
  %s5 = inlined_call_operand.hbm [shape: bf16[2,2,64,192], index: 5, kind: output, shape index: {}]
  %s6 = sld [smem:[#allocation0]]
  $region53: #{output_layer_forward.1} parent=0
    _
  %s8 = ssub.s32 1, %s6
  %s9 = scalar_select 0, %s8, %s6
  $region1: #{output_layer_forward.1} parent=0
    #allocation2 [shape = 'u8[131072]{0}', space=vmem, size = 0x20000, scoped, tag = 'output window, operand 0']
    #allocation3 [shape = 's32[2]{0}', space=sflag, size = 0x8, scoped, tag = 'scoped memory for output_layer_forward.1']
    %10 = vsyncpa [#allocation3], 0
    %s11 = scalar_lea.sflag [#allocation3], 1
    %12 = vsyncpa %s11, 0
    loop: start=0, step=1, limit=4
    $region2: #{output_layer_forward.1} parent=1 // loop_pre_header
      _
    $region3: #{output_layer_forward.1} parent=1 // loop_header
      %s14 = sphi 0, %s18
      %p15 = scmp.ge.s32.totalorder %s14, 4
      %s21 = sphi 0, %s33
      %s22 = sphi 0, %s29
      %s23 = sphi 0, %s21
      %s24 = sphi 0, %s22
      %s25 = sphi 0, %s23
      %s26 = sphi 0, %s24
      %s38 = sphi 0, %s40
      %s41 = sphi 0, %s38
      %s42 = sphi 0, %s41
      %s58 = sphi 0, %s42
      %s62 = sphi 0, %s62
      %s64 = sphi 0, %s62
      %s65 = sphi 0, %s64
      %s79 = sphi 0, %s65
      %s83 = sphi 0, %s83
      %s85 = sphi 0, %s83
      %s86 = sphi 0, %s85
      %s100 = sphi 0, %s86
      %s104 = sphi 0, %s104
      %s106 = sphi 0, %s104
      %s107 = sphi 0, %s106
      %s121 = sphi 0, %s107
      %s125 = sphi 0, %s125
      %s127 = sphi 0, %s125
      %s128 = sphi 0, %s127
      %s142 = sphi 0, %s128
      %s150 = sphi 0, %s152
      %s153 = sphi 0, %s150
      %s154 = sphi 0, %s153
      %s170 = sphi 0, %s154
    $region4: #{output_layer_forward.1} parent=1 // loop_header_branch
      %17 = sbr.rel (%p15) target = $region8
    $region5: #{output_layer_forward.1} parent=1 // loop_body
      %s19 = ssub.s32 %s14, 1
      %s20 = ssub.s32 %s14, 2
      %s27 = sadd.s32 1, %s22
      %p28 = scmp.ge.s32.totalorder %s27, 1
      %s29 = scalar_select %p28, 0, %s27
      %s30 = sadd.s32 1, %s21
      %s31 = scalar_select %p28, %s30, %s21
      %p32 = scmp.ge.s32.totalorder %s31, 2
      %s33 = scalar_select %p32, 0, %s31
      %s34 = ssub.s32 %s21, %s33
      %s35 = ssub.s32 %s22, %s29
      %s36 = sor.u32 %s34, %s35
      %p37 = scmp.eq.s32.totalorder %s36, 0
      %s39 = sadd.s32 %s38, 1
      %s40 = scalar_select %p37, %s38, %s39
      %p43 = pneg %p37
      %p44 = scmp.eq.s32.totalorder %s14, 1
      %p45 = por %p43, %p44
      %p46 = scmp.ne.s32.totalorder %s38, %s41
      %p47 = scmp.eq.s32.totalorder %s14, 0
      %p48 = por %p46, %p47
      %p49 = scmp.ne.s32.totalorder %s38, %s41
      %p50 = scmp.eq.s32.totalorder %s19, 1
      %p51 = por %p49, %p50
      %p52 = scmp.ne.s32.totalorder %s41, %s42
      %p53 = scmp.eq.s32.totalorder %s19, 0
      %p54 = por %p52, %p53
      %p55 = scmp.ne.s32.totalorder %s41, %s42
      %p56 = scmp.eq.s32.totalorder %s20, 1
      %p57 = por %p55, %p56
      %p59 = scmp.ne.s32.totalorder %s42, %s58
      %p60 = scmp.eq.s32.totalorder %s20, 0
      %p61 = por %p59, %p60
      %s63 = sadd.s32 %s62, 1
      %p66 = scmp.eq.s32.totalorder %s14, 1
      %p67 = scmp.ne.s32.totalorder %s62, %s64
      %p68 = scmp.eq.s32.totalorder %s14, 0
      %p69 = por %p67, %p68
      %p70 = scmp.ne.s32.totalorder %s62, %s64
      %p71 = scmp.eq.s32.totalorder %s19, 1
      %p72 = por %p70, %p71
      %p73 = scmp.ne.s32.totalorder %s64, %s65
      %p74 = scmp.eq.s32.totalorder %s19, 0
      %p75 = por %p73, %p74
      %p76 = scmp.ne.s32.totalorder %s64, %s65
      %p77 = scmp.eq.s32.totalorder %s20, 1
      %p78 = por %p76, %p77
      %p80 = scmp.ne.s32.totalorder %s65, %s79
      %p81 = scmp.eq.s32.totalorder %s20, 0
      %p82 = por %p80, %p81
      %s84 = sadd.s32 %s83, 1
      %p87 = scmp.eq.s32.totalorder %s14, 1
      %p88 = scmp.ne.s32.totalorder %s83, %s85
      %p89 = scmp.eq.s32.totalorder %s14, 0
      %p90 = por %p88, %p89
      %p91 = scmp.ne.s32.totalorder %s83, %s85
      %p92 = scmp.eq.s32.totalorder %s19, 1
      %p93 = por %p91, %p92
      %p94 = scmp.ne.s32.totalorder %s85, %s86
      %p95 = scmp.eq.s32.totalorder %s19, 0
      %p96 = por %p94, %p95
      %p97 = scmp.ne.s32.totalorder %s85, %s86
      %p98 = scmp.eq.s32.totalorder %s20, 1
      %p99 = por %p97, %p98
      %p101 = scmp.ne.s32.totalorder %s86, %s100
      %p102 = scmp.eq.s32.totalorder %s20, 0
      %p103 = por %p101, %p102
      %s105 = sadd.s32 %s104, 1
      %p108 = scmp.eq.s32.totalorder %s14, 1
      %p109 = scmp.ne.s32.totalorder %s104, %s106
      %p110 = scmp.eq.s32.totalorder %s14, 0
      %p111 = por %p109, %p110
      %p112 = scmp.ne.s32.totalorder %s104, %s106
      %p113 = scmp.eq.s32.totalorder %s19, 1
      %p114 = por %p112, %p113
      %p115 = scmp.ne.s32.totalorder %s106, %s107
      %p116 = scmp.eq.s32.totalorder %s19, 0
      %p117 = por %p115, %p116
      %p118 = scmp.ne.s32.totalorder %s106, %s107
      %p119 = scmp.eq.s32.totalorder %s20, 1
      %p120 = por %p118, %p119
      %p122 = scmp.ne.s32.totalorder %s107, %s121
      %p123 = scmp.eq.s32.totalorder %s20, 0
      %p124 = por %p122, %p123
      %s126 = sadd.s32 %s125, 1
      %p129 = scmp.eq.s32.totalorder %s14, 1
      %p130 = scmp.ne.s32.totalorder %s125, %s127
      %p131 = scmp.eq.s32.totalorder %s14, 0
      %p132 = por %p130, %p131
      %p133 = scmp.ne.s32.totalorder %s125, %s127
      %p134 = scmp.eq.s32.totalorder %s19, 1
      %p135 = por %p133, %p134
      %p136 = scmp.ne.s32.totalorder %s127, %s128
      %p137 = scmp.eq.s32.totalorder %s19, 0
      %p138 = por %p136, %p137
      %p139 = scmp.ne.s32.totalorder %s127, %s128
      %p140 = scmp.eq.s32.totalorder %s20, 1
      %p141 = por %p139, %p140
      %p143 = scmp.ne.s32.totalorder %s128, %s142
      %p144 = scmp.eq.s32.totalorder %s20, 0
      %p145 = por %p143, %p144
      %s146 = ssub.s32 %s21, %s33
      %s147 = ssub.s32 %s22, %s29
      %s148 = sor.u32 %s146, %s147
      %p149 = scmp.eq.s32.totalorder %s148, 0
      %s151 = sadd.s32 %s150, 1
      %s152 = scalar_select %p149, %s150, %s151
      %p155 = pneg %p149
      %p156 = scmp.eq.s32.totalorder %s14, 1
      %p157 = por %p155, %p156
      %p158 = scmp.ne.s32.totalorder %s150, %s153
      %p159 = scmp.eq.s32.totalorder %s14, 0
      %p160 = por %p158, %p159
      %p161 = scmp.ne.s32.totalorder %s150, %s153
      %p162 = scmp.eq.s32.totalorder %s19, 1
      %p163 = por %p161, %p162
      %p164 = scmp.ne.s32.totalorder %s153, %s154
      %p165 = scmp.eq.s32.totalorder %s19, 0
      %p166 = por %p164, %p165
      %p167 = scmp.ne.s32.totalorder %s153, %s154
      %p168 = scmp.eq.s32.totalorder %s20, 1
      %p169 = por %p167, %p168
      %p171 = scmp.ne.s32.totalorder %s154, %s170
      %p172 = scmp.eq.s32.totalorder %s20, 0
      %p173 = por %p171, %p172
      %p174 = scmp.le.s32.totalorder 1, %s14
      %p175 = scmp.lt.s32.totalorder %s14, 3
      %p176 = pnand %p174, %p175
      %p177 = pneg %p176
      // Predicated region
      $region9: #{output_layer_forward.1} parent=5 // pred_check
        _
      $region10: #{output_layer_forward.1} parent=5 // pred_check_branch
        %179 = sbr.rel (%p176) target = $region12
      $region11: #{output_layer_forward.1} parent=5 // pred_region
        %s180 = ssub.s32 %s14, 1
        // Predicated region
        $region13: #{output_layer_forward.1} parent=11 // pred_check
          %p181 = pneg %p75
        $region14: #{output_layer_forward.1} parent=11 // pred_check_branch
          %183 = sbr.rel (%p181) target = $region16
        $region15: #{output_layer_forward.1} parent=11 // pred_region
          _
        $region16: #{output_layer_forward.1} parent=11 // pred_fallthru
          _
        // Predicated region
        $region17: #{output_layer_forward.1} parent=11 // pred_check
          %p184 = pneg %p96
        $region18: #{output_layer_forward.1} parent=11 // pred_check_branch
          %186 = sbr.rel (%p184) target = $region20
        $region19: #{output_layer_forward.1} parent=11 // pred_region
          _
        $region20: #{output_layer_forward.1} parent=11 // pred_fallthru
          _
        // Predicated region
        $region21: #{output_layer_forward.1} parent=11 // pred_check
          %p187 = pneg %p117
        $region22: #{output_layer_forward.1} parent=11 // pred_check_branch
          %189 = sbr.rel (%p187) target = $region24
        $region23: #{output_layer_forward.1} parent=11 // pred_region
          _
        $region24: #{output_layer_forward.1} parent=11 // pred_fallthru
          _
        // Predicated region
        $region25: #{output_layer_forward.1} parent=11 // pred_check
          %p190 = pneg %p138
        $region26: #{output_layer_forward.1} parent=11 // pred_check_branch
          %192 = sbr.rel (%p190) target = $region28
        $region27: #{output_layer_forward.1} parent=11 // pred_region
          _
        $region28: #{output_layer_forward.1} parent=11 // pred_fallthru
          _
      $region12: #{output_layer_forward.1} parent=5 // pred_fallthru
        _
      %p193 = scmp.lt.s32.totalorder %s14, 2
      // Predicated region
      $region29: #{output_layer_forward.1} parent=5 // pred_check
        %p194 = pneg %p193
      $region30: #{output_layer_forward.1} parent=5 // pred_check_branch
        %196 = sbr.rel (%p194) target = $region32
      $region31: #{output_layer_forward.1} parent=5 // pred_region
        // Predicated region
        $region33: #{output_layer_forward.1} parent=31 // pred_check
          %p197 = pneg %p48
        $region34: #{output_layer_forward.1} parent=31 // pred_check_branch
          %199 = sbr.rel (%p197) target = $region36
        $region35: #{output_layer_forward.1} parent=31 // pred_region
          %s200 = smul.u32 2, %s21
          %s201 = smul.u32 2, %s22
          %p202 = scmp.lt.s32.totalorder %s200, 3
          %s203 = scalar_select %p202, %s200, 3
          %p204 = scmp.lt.s32.totalorder %s201, 1
          %s205 = scalar_select %p204, %s201, 1
          %s206 = smul.addr %s203, 16
          %s207 = sadd.s32 %s205, %s206
          %s208 = smul.addr %s207, 4
          %s209 = scalar_lea.vmem %s0, %s208
          %s210 = smul.u32 2, %s21
          %s211 = smul.u32 2, %s22
        $region36: #{output_layer_forward.1} parent=31 // pred_fallthru
          _
      $region32: #{output_layer_forward.1} parent=5 // pred_fallthru
        _
      %p212 = scmp.le.s32.totalorder 1, %s14
      %p213 = scmp.lt.s32.totalorder %s14, 3
      %p214 = pnand %p212, %p213
      %p215 = pneg %p214
      // Predicated region
      $region37: #{output_layer_forward.1} parent=5 // pred_check
        _
      $region38: #{output_layer_forward.1} parent=5 // pred_check_branch
        %217 = sbr.rel (%p214) target = $region40
      $region39: #{output_layer_forward.1} parent=5 // pred_region
        %s218 = ssub.s32 %s14, 1
        %s219 = smul.u32 2, %s23
        %s220 = smul.u32 2, %s24
        %p221 = scmp.lt.s32.totalorder %s219, 3
        %s222 = scalar_select %p221, %s219, 3
        %p223 = scmp.lt.s32.totalorder %s220, 1
        %s224 = scalar_select %p223, %s220, 1
        %s225 = smul.addr %s222, 16
        %s226 = sadd.s32 %s224, %s225
        %s227 = smul.addr %s226, 4
        %s228 = scalar_lea.vmem %s0, %s227
        %p229 = pneg %p54
        %p230 = pneg %p51
        %p231 = pneg %p75
        %p232 = pneg %p72
        %p233 = pneg %p96
        %p234 = pneg %p93
        %p235 = pneg %p117
        %p236 = pneg %p114
        %p237 = pneg %p138
        %p238 = pneg %p135
        %p239 = pneg %p166
        %p240 = pneg %p163
        %s241 = sand.u32 %s153, 1
        %s242 = scalar_lea.sflag [#allocation3], %s241
        %s243 = sand.u32 %s153, 1
        %s244 = smul.addr %s243, 128
        %s245 = scalar_lea.vmem [#allocation2], %s244
        %s246 = smul.u32 2, %s23
        %s247 = smul.u32 2, %s24
        %p248 = scmp.lt.s32.totalorder %s246, 3
        %s249 = scalar_select %p248, %s246, 3
        %p250 = scmp.lt.s32.totalorder %s247, 1
        %s251 = scalar_select %p250, %s247, 1
        %s252 = smul.addr %s249, 16
        %s253 = sadd.s32 %s251, %s252
        %s254 = smul.addr %s253, 4
        %s255 = scalar_lea.vmem %s0, %s254
        %s256 = smul.u32 2, %s23
        %s257 = smul.u32 2, %s24
        %s258 = smul.u32 2, %s24
        %v260 = vld [vmem:[%s255] sm:$0xff]
        %v261 = vld [vmem:[%s255 + $0x8] sm:$0xff]
        %v262 = vld [vmem:[%s255 + $0x10] sm:$0xff]
        %v263 = vld [vmem:[%s255 + $0x18] sm:$0xff]
        %v264 = vld [vmem:[%s255 + $0x20] sm:$0xff]
        %v265 = vld [vmem:[%s255 + $0x28] sm:$0xff]
        %v266 = vld [vmem:[%s255 + $0x30] sm:$0xff]
        %v267 = vld [vmem:[%s255 + $0x38] sm:$0xff]
        %v268 = vld [vmem:[%s1] sm:$0xf]
        %v269 = vld [vmem:[%s1 + $0x4] sm:$0xf]
        %v270 = vld [vmem:[%s1 + $0x8] sm:$0xf]
        %v271 = vld [vmem:[%s1 + $0xc] sm:$0xf]
        %v272 = vld [vmem:[%s1 + $0x10] sm:$0xf]
        %v273 = vld [vmem:[%s1 + $0x14] sm:$0xf]
        %v274 = vld [vmem:[%s1 + $0x18] sm:$0xf]
        %v275 = vld [vmem:[%s1 + $0x1c] sm:$0xf]
        %v276 = vld [vmem:[%s1 + $0x20] sm:$0xf]
        %v277 = vld [vmem:[%s1 + $0x24] sm:$0xf]
        %v278 = vld [vmem:[%s1 + $0x28] sm:$0xf]
        %v279 = vld [vmem:[%s1 + $0x2c] sm:$0xf]
        %v280 = vld [vmem:[%s1 + $0x30] sm:$0xf]
        %v281 = vld [vmem:[%s1 + $0x34] sm:$0xf]
        %v282 = vld [vmem:[%s1 + $0x38] sm:$0xf]
        %v283 = vld [vmem:[%s1 + $0x3c] sm:$0xf]
        %v284 = vld [vmem:[%s1 + $0x40] sm:$0xf]
        %v285 = vld [vmem:[%s1 + $0x44] sm:$0xf]
        %v286 = vld [vmem:[%s1 + $0x48] sm:$0xf]
        %v287 = vld [vmem:[%s1 + $0x4c] sm:$0xf]
        %v288 = vld [vmem:[%s1 + $0x50] sm:$0xf]
        %v289 = vld [vmem:[%s1 + $0x54] sm:$0xf]
        %v290 = vld [vmem:[%s1 + $0x58] sm:$0xf]
        %v291 = vld [vmem:[%s1 + $0x5c] sm:$0xf]
        %v292 = vld [vmem:[%s1 + $0x60] sm:$0xf]
        %v293 = vld [vmem:[%s1 + $0x64] sm:$0xf]
        %v294 = vld [vmem:[%s1 + $0x68] sm:$0xf]
        %v295 = vld [vmem:[%s1 + $0x6c] sm:$0xf]
        %v296 = vld [vmem:[%s1 + $0x70] sm:$0xf]
        %v297 = vld [vmem:[%s1 + $0x74] sm:$0xf]
        %v298 = vld [vmem:[%s1 + $0x78] sm:$0xf]
        %v299 = vld [vmem:[%s1 + $0x7c] sm:$0xf]
        %v300 = vld [vmem:[%s2] sm:$0xff]
        %v301 = vld [vmem:[%s2 + $0x8] sm:$0xff]
        %v302 = vld [vmem:[%s2 + $0x10] sm:$0xff]
        %v303 = vld [vmem:[%s2 + $0x18] sm:$0xff]
        %v304 = vld [vmem:[%s2 + $0x20] sm:$0xff]
        %v305 = vld [vmem:[%s2 + $0x28] sm:$0xff]
        %v306 = vld [vmem:[%s2 + $0x30] sm:$0xff]
        %v307 = vld [vmem:[%s2 + $0x38] sm:$0xff]
        %v308 = vld [vmem:[%s2 + $0x40] sm:$0xff]
        %v309 = vld [vmem:[%s2 + $0x48] sm:$0xff]
        %v310 = vld [vmem:[%s2 + $0x50] sm:$0xff]
        %v311 = vld [vmem:[%s2 + $0x58] sm:$0xff]
        %v312 = vld [vmem:[%s2 + $0x60] sm:$0xff]
        %v313 = vld [vmem:[%s2 + $0x68] sm:$0xff]
        %v314 = vld [vmem:[%s2 + $0x70] sm:$0xff]
        %v315 = vld [vmem:[%s2 + $0x78] sm:$0xff]
        %v316 = vld [vmem:[%s2 + $0x80] sm:$0xff]
        %v317 = vld [vmem:[%s2 + $0x88] sm:$0xff]
        %v318 = vld [vmem:[%s2 + $0x90] sm:$0xff]
        %v319 = vld [vmem:[%s2 + $0x98] sm:$0xff]
        %v320 = vld [vmem:[%s2 + $0xa0] sm:$0xff]
        %v321 = vld [vmem:[%s2 + $0xa8] sm:$0xff]
        %v322 = vld [vmem:[%s2 + $0xb0] sm:$0xff]
        %v323 = vld [vmem:[%s2 + $0xb8] sm:$0xff]
        %v324 = vld [vmem:[%s2 + $0xc0] sm:$0xff]
        %v325 = vld [vmem:[%s2 + $0xc8] sm:$0xff]
        %v326 = vld [vmem:[%s2 + $0xd0] sm:$0xff]
        %v327 = vld [vmem:[%s2 + $0xd8] sm:$0xff]
        %v328 = vld [vmem:[%s2 + $0xe0] sm:$0xff]
        %v329 = vld [vmem:[%s2 + $0xe8] sm:$0xff]
        %v330 = vld [vmem:[%s2 + $0xf0] sm:$0xff]
        %v331 = vld [vmem:[%s2 + $0xf8] sm:$0xff]
        %333 = vset.pattern.permute.xlu0 0
        %334 = vperm.xlu0 %333, %v300
        %v335 = vpop.permute.xlu0 %334
        %338 = vset.pattern.permute.xlu0 0
        %339 = vperm.xlu0 %338, %v301
        %v340 = vpop.permute.xlu0 %339
        %343 = vset.pattern.permute.xlu0 0
        %344 = vperm.xlu0 %343, %v302
        %v345 = vpop.permute.xlu0 %344
        %348 = vset.pattern.permute.xlu0 0
        %349 = vperm.xlu0 %348, %v303
        %v350 = vpop.permute.xlu0 %349
        %353 = vset.pattern.permute.xlu0 0
        %354 = vperm.xlu0 %353, %v304
        %v355 = vpop.permute.xlu0 %354
        %358 = vset.pattern.permute.xlu0 0
        %359 = vperm.xlu0 %358, %v305
        %v360 = vpop.permute.xlu0 %359
        %363 = vset.pattern.permute.xlu0 0
        %364 = vperm.xlu0 %363, %v306
        %v365 = vpop.permute.xlu0 %364
        %368 = vset.pattern.permute.xlu0 0
        %369 = vperm.xlu0 %368, %v307
        %v370 = vpop.permute.xlu0 %369
        %373 = vset.pattern.permute.xlu0 0
        %374 = vperm.xlu0 %373, %v308
        %v375 = vpop.permute.xlu0 %374
        %378 = vset.pattern.permute.xlu0 0
        %379 = vperm.xlu0 %378, %v309
        %v380 = vpop.permute.xlu0 %379
        %383 = vset.pattern.permute.xlu0 0
        %384 = vperm.xlu0 %383, %v310
        %v385 = vpop.permute.xlu0 %384
        %388 = vset.pattern.permute.xlu0 0
        %389 = vperm.xlu0 %388, %v311
        %v390 = vpop.permute.xlu0 %389
        %393 = vset.pattern.permute.xlu0 0
        %394 = vperm.xlu0 %393, %v312
        %v395 = vpop.permute.xlu0 %394
        %398 = vset.pattern.permute.xlu0 0
        %399 = vperm.xlu0 %398, %v313
        %v400 = vpop.permute.xlu0 %399
        %403 = vset.pattern.permute.xlu0 0
        %404 = vperm.xlu0 %403, %v314
        %v405 = vpop.permute.xlu0 %404
        %408 = vset.pattern.permute.xlu0 0
        %409 = vperm.xlu0 %408, %v315
        %v410 = vpop.permute.xlu0 %409
        %413 = vset.pattern.permute.xlu0 0
        %414 = vperm.xlu0 %413, %v316
        %v415 = vpop.permute.xlu0 %414
        %418 = vset.pattern.permute.xlu0 0
        %419 = vperm.xlu0 %418, %v317
        %v420 = vpop.permute.xlu0 %419
        %423 = vset.pattern.permute.xlu0 0
        %424 = vperm.xlu0 %423, %v318
        %v425 = vpop.permute.xlu0 %424
        %428 = vset.pattern.permute.xlu0 0
        %429 = vperm.xlu0 %428, %v319
        %v430 = vpop.permute.xlu0 %429
        %433 = vset.pattern.permute.xlu0 0
        %434 = vperm.xlu0 %433, %v320
        %v435 = vpop.permute.xlu0 %434
        %438 = vset.pattern.permute.xlu0 0
        %439 = vperm.xlu0 %438, %v321
        %v440 = vpop.permute.xlu0 %439
        %443 = vset.pattern.permute.xlu0 0
        %444 = vperm.xlu0 %443, %v322
        %v445 = vpop.permute.xlu0 %444
        %448 = vset.pattern.permute.xlu0 0
        %449 = vperm.xlu0 %448, %v323
        %v450 = vpop.permute.xlu0 %449
        %453 = vset.pattern.permute.xlu0 0
        %454 = vperm.xlu0 %453, %v324
        %v455 = vpop.permute.xlu0 %454
        %458 = vset.pattern.permute.xlu0 0
        %459 = vperm.xlu0 %458, %v325
        %v460 = vpop.permute.xlu0 %459
        %463 = vset.pattern.permute.xlu0 0
        %464 = vperm.xlu0 %463, %v326
        %v465 = vpop.permute.xlu0 %464
        %468 = vset.pattern.permute.xlu0 0
        %469 = vperm.xlu0 %468, %v327
        %v470 = vpop.permute.xlu0 %469
        %473 = vset.pattern.permute.xlu0 0
        %474 = vperm.xlu0 %473, %v328
        %v475 = vpop.permute.xlu0 %474
        %478 = vset.pattern.permute.xlu0 0
        %479 = vperm.xlu0 %478, %v329
        %v480 = vpop.permute.xlu0 %479
        %483 = vset.pattern.permute.xlu0 0
        %484 = vperm.xlu0 %483, %v330
        %v485 = vpop.permute.xlu0 %484
        %488 = vset.pattern.permute.xlu0 0
        %489 = vperm.xlu0 %488, %v331
        %v490 = vpop.permute.xlu0 %489
        %v524 = vunpack.c.l.b16 %v268
        %v525 = vunpack.c.l.b16 %v269
        %v526 = vunpack.c.l.b16 %v270
        %v527 = vunpack.c.l.b16 %v271
        %v528 = vunpack.c.l.b16 %v272
        %v529 = vunpack.c.l.b16 %v273
        %v530 = vunpack.c.l.b16 %v274
        %v531 = vunpack.c.l.b16 %v275
        %v532 = vunpack.c.l.b16 %v276
        %v533 = vunpack.c.l.b16 %v277
        %v534 = vunpack.c.l.b16 %v278
        %v535 = vunpack.c.l.b16 %v279
        %v536 = vunpack.c.l.b16 %v280
        %v537 = vunpack.c.l.b16 %v281
        %v538 = vunpack.c.l.b16 %v282
        %v539 = vunpack.c.l.b16 %v283
        %v540 = vunpack.c.l.b16 %v284
        %v541 = vunpack.c.l.b16 %v285
        %v542 = vunpack.c.l.b16 %v286
        %v543 = vunpack.c.l.b16 %v287
        %v544 = vunpack.c.l.b16 %v288
        %v545 = vunpack.c.l.b16 %v289
        %v546 = vunpack.c.l.b16 %v290
        %v547 = vunpack.c.l.b16 %v291
        %v548 = vunpack.c.l.b16 %v292
        %v549 = vunpack.c.l.b16 %v293
        %v550 = vunpack.c.l.b16 %v294
        %v551 = vunpack.c.l.b16 %v295
        %v552 = vunpack.c.l.b16 %v296
        %v553 = vunpack.c.l.b16 %v297
        %v554 = vunpack.c.l.b16 %v298
        %v555 = vunpack.c.l.b16 %v299
        %v556 = vpack.c.b16 %v525, %v524
        %v557 = vpack.c.b16 %v527, %v526
        %v558 = vpack.c.b16 %v529, %v528
        %v559 = vpack.c.b16 %v531, %v530
        %v560 = vpack.c.b16 %v533, %v532
        %v561 = vpack.c.b16 %v535, %v534
        %v562 = vpack.c.b16 %v537, %v536
        %v563 = vpack.c.b16 %v539, %v538
        %v564 = vpack.c.b16 %v541, %v540
        %v565 = vpack.c.b16 %v543, %v542
        %v566 = vpack.c.b16 %v545, %v544
        %v567 = vpack.c.b16 %v547, %v546
        %v568 = vpack.c.b16 %v549, %v548
        %v569 = vpack.c.b16 %v551, %v550
        %v570 = vpack.c.b16 %v553, %v552
        %v571 = vpack.c.b16 %v555, %v554
        %v580 = vunpack.c.l.b16 %v260
        %v581 = vunpack.c.h.b16 %v260
        %v582 = vunpack.c.l.b16 %v261
        %v583 = vunpack.c.h.b16 %v261
        %v584 = vunpack.c.l.b16 %v262
        %v585 = vunpack.c.h.b16 %v262
        %v586 = vunpack.c.l.b16 %v263
        %v587 = vunpack.c.h.b16 %v263
        %v588 = vunpack.c.l.b16 %v264
        %v589 = vunpack.c.h.b16 %v264
        %v590 = vunpack.c.l.b16 %v265
        %v591 = vunpack.c.h.b16 %v265
        %v592 = vunpack.c.l.b16 %v266
        %v593 = vunpack.c.h.b16 %v266
        %v594 = vunpack.c.l.b16 %v267
        %v595 = vunpack.c.h.b16 %v267
        %v596 = vpack.c.b16 %v582, %v580
        %v597 = vpack.c.b16 %v583, %v581
        %v598 = vpack.c.b16 %v586, %v584
        %v599 = vpack.c.b16 %v587, %v585
        %v600 = vpack.c.b16 %v590, %v588
        %v601 = vpack.c.b16 %v591, %v589
        %v602 = vpack.c.b16 %v594, %v592
        %v603 = vpack.c.b16 %v595, %v593
        %vm612 = vcmask 523264
        %v614 = vsel %vm612, %v556, 0
        %v617 = vsel %vm612, %v557, 0
        %v620 = vsel %vm612, %v558, 0
        %v623 = vsel %vm612, %v559, 0
        %v626 = vsel %vm612, %v560, 0
        %v629 = vsel %vm612, %v561, 0
        %v632 = vsel %vm612, %v562, 0
        %v635 = vsel %vm612, %v563, 0
        %v638 = vsel %vm612, %v564, 0
        %v641 = vsel %vm612, %v565, 0
        %v644 = vsel %vm612, %v566, 0
        %v647 = vsel %vm612, %v567, 0
        %v650 = vsel %vm612, %v568, 0
        %v653 = vsel %vm612, %v569, 0
        %v656 = vsel %vm612, %v570, 0
        %v659 = vsel %vm612, %v571, 0
        %661 = vmatprep.subr.bf16.mxu0 %v597
        %662 = vmatpush1.bf16.msra.mxu0 %v596
        %663 = vmatprep.subr.bf16.mxu0 %v599
        %664 = vmatpush1.bf16.msra.mxu0 %v598
        %665 = vmatprep.subr.bf16.mxu0 %v601
        %666 = vmatpush1.bf16.msra.mxu0 %v600
        %667 = vmatprep.subr.bf16.mxu0 %v603
        %668 = vmatpush1.bf16.msra.mxu0 %v602
        %669 = vmatprep.subr.bf16.mxu0 0
        %670 = vmatpush1.bf16.msra.mxu0 0
        %671 = vmatprep.subr.bf16.mxu0 0
        %672 = vmatpush1.bf16.msra.mxu0 0
        %673 = vmatprep.subr.bf16.mxu0 0
        %674 = vmatpush1.bf16.msra.mxu0 0
        %675 = vmatprep.subr.bf16.mxu0 0
        %676 = vmatpush1.bf16.msra.mxu0 0
        %677 = vmatprep.subr.bf16.mxu0 0
        %678 = vmatpush1.bf16.msra.mxu0 0
        %679 = vmatprep.subr.bf16.mxu0 0
        %680 = vmatpush1.bf16.msra.mxu0 0
        %681 = vmatprep.subr.bf16.mxu0 0
        %682 = vmatpush1.bf16.msra.mxu0 0
        %683 = vmatprep.subr.bf16.mxu0 0
        %684 = vmatpush1.bf16.msra.mxu0 0
        %685 = vmatprep.subr.bf16.mxu0 0
        %686 = vmatpush1.bf16.msra.mxu0 0
        %687 = vmatprep.subr.bf16.mxu0 0
        %688 = vmatpush1.bf16.msra.mxu0 0
        %689 = vmatprep.subr.bf16.mxu0 0
        %690 = vmatpush1.bf16.msra.mxu0 0
        %691 = vmatprep.subr.bf16.mxu0 0
        %692 = vmatpush1.bf16.msra.mxu0 0
        %693 = vmatprep.mubr.bf16.mxu0 0
        %694 = vmatmul.mubr.bf16.gmra.mrb[0].mxu0 %v614
        %v695 = vpop.f32.mrb[0].mxu0
        %v696 = vadd.f32 %v335, %v695
        %v697 = vpop.f32.mrb[0].mxu0
        %v698 = vadd.f32 %v335, %v697
        %v699 = vpop.f32.mrb[0].mxu0
        %v700 = vadd.f32 %v340, %v699
        %v701 = vpop.f32.mrb[0].mxu0
        %v702 = vadd.f32 %v340, %v701
        %703 = vmatprep.mubr.bf16.mxu0 0
        %704 = vmatmul.mubr.bf16.gmra.mrb[0].mxu0 %v617
        %v705 = vpop.f32.mrb[0].mxu0
        %v706 = vadd.f32 %v345, %v705
        %v707 = vpop.f32.mrb[0].mxu0
        %v708 = vadd.f32 %v345, %v707
        %v709 = vpop.f32.mrb[0].mxu0
        %v710 = vadd.f32 %v350, %v709
        %v711 = vpop.f32.mrb[0].mxu0
        %v712 = vadd.f32 %v350, %v711
        %713 = vmatprep.mubr.bf16.mxu0 0
        %714 = vmatmul.mubr.bf16.gmra.mrb[0].mxu0 %v620
        %v715 = vpop.f32.mrb[0].mxu0
        %v716 = vadd.f32 %v355, %v715
        %v717 = vpop.f32.mrb[0].mxu0
        %v718 = vadd.f32 %v355, %v717
        %v719 = vpop.f32.mrb[0].mxu0
        %v720 = vadd.f32 %v360, %v719
        %v721 = vpop.f32.mrb[0].mxu0
        %v722 = vadd.f32 %v360, %v721
        %723 = vmatprep.mubr.bf16.mxu0 0
        %724 = vmatmul.mubr.bf16.gmra.mrb[0].mxu0 %v623
        %v725 = vpop.f32.mrb[0].mxu0
        %v726 = vadd.f32 %v365, %v725
        %v727 = vpop.f32.mrb[0].mxu0
        %v728 = vadd.f32 %v365, %v727
        %v729 = vpop.f32.mrb[0].mxu0
        %v730 = vadd.f32 %v370, %v729
        %v731 = vpop.f32.mrb[0].mxu0
        %v732 = vadd.f32 %v370, %v731
        %733 = vmatprep.mubr.bf16.mxu0 0
        %734 = vmatmul.mubr.bf16.gmra.mrb[0].mxu0 %v626
        %v735 = vpop.f32.mrb[0].mxu0
        %v736 = vadd.f32 %v375, %v735
        %v737 = vpop.f32.mrb[0].mxu0
        %v738 = vadd.f32 %v375, %v737
        %v739 = vpop.f32.mrb[0].mxu0
        %v740 = vadd.f32 %v380, %v739
        %v741 = vpop.f32.mrb[0].mxu0
        %v742 = vadd.f32 %v380, %v741
        %743 = vmatprep.mubr.bf16.mxu0 0
        %744 = vmatmul.mubr.bf16.gmra.mrb[0].mxu0 %v629
        %v745 = vpop.f32.mrb[0].mxu0
        %v746 = vadd.f32 %v385, %v745
        %v747 = vpop.f32.mrb[0].mxu0
        %v748 = vadd.f32 %v385, %v747
        %v749 = vpop.f32.mrb[0].mxu0
        %v750 = vadd.f32 %v390, %v749
        %v751 = vpop.f32.mrb[0].mxu0
        %v752 = vadd.f32 %v390, %v751
        %753 = vmatprep.mubr.bf16.mxu0 0
        %754 = vmatmul.mubr.bf16.gmra.mrb[0].mxu0 %v632
        %v755 = vpop.f32.mrb[0].mxu0
        %v756 = vadd.f32 %v395, %v755
        %v757 = vpop.f32.mrb[0].mxu0
        %v758 = vadd.f32 %v395, %v757
        %v759 = vpop.f32.mrb[0].mxu0
        %v760 = vadd.f32 %v400, %v759
        %v761 = vpop.f32.mrb[0].mxu0
        %v762 = vadd.f32 %v400, %v761
        %763 = vmatprep.mubr.bf16.mxu0 0
        %764 = vmatmul.mubr.bf16.gmra.mrb[0].mxu0 %v635
        %v765 = vpop.f32.mrb[0].mxu0
        %v766 = vadd.f32 %v405, %v765
        %v767 = vpop.f32.mrb[0].mxu0
        %v768 = vadd.f32 %v405, %v767
        %v769 = vpop.f32.mrb[0].mxu0
        %v770 = vadd.f32 %v410, %v769
        %v771 = vpop.f32.mrb[0].mxu0
        %v772 = vadd.f32 %v410, %v771
        %773 = vmatprep.mubr.bf16.mxu0 0
        %774 = vmatmul.mubr.bf16.gmra.mrb[0].mxu0 %v638
        %v775 = vpop.f32.mrb[0].mxu0
        %v776 = vadd.f32 %v415, %v775
        %v777 = vpop.f32.mrb[0].mxu0
        %v778 = vadd.f32 %v415, %v777
        %v779 = vpop.f32.mrb[0].mxu0
        %v780 = vadd.f32 %v420, %v779
        %v781 = vpop.f32.mrb[0].mxu0
        %v782 = vadd.f32 %v420, %v781
        %783 = vmatprep.mubr.bf16.mxu0 0
        %784 = vmatmul.mubr.bf16.gmra.mrb[0].mxu0 %v641
        %v785 = vpop.f32.mrb[0].mxu0
        %v786 = vadd.f32 %v425, %v785
        %v787 = vpop.f32.mrb[0].mxu0
        %v788 = vadd.f32 %v425, %v787
        %v789 = vpop.f32.mrb[0].mxu0
        %v790 = vadd.f32 %v430, %v789
        %v791 = vpop.f32.mrb[0].mxu0
        %v792 = vadd.f32 %v430, %v791
        %793 = vmatprep.mubr.bf16.mxu0 0
        %794 = vmatmul.mubr.bf16.gmra.mrb[0].mxu0 %v644
        %v795 = vpop.f32.mrb[0].mxu0
        %v796 = vadd.f32 %v435, %v795
        %v797 = vpop.f32.mrb[0].mxu0
        %v798 = vadd.f32 %v435, %v797
        %v799 = vpop.f32.mrb[0].mxu0
        %v800 = vadd.f32 %v440, %v799
        %v801 = vpop.f32.mrb[0].mxu0
        %v802 = vadd.f32 %v440, %v801
        %803 = vmatprep.mubr.bf16.mxu0 0
        %804 = vmatmul.mubr.bf16.gmra.mrb[0].mxu0 %v647
        %v805 = vpop.f32.mrb[0].mxu0
        %v806 = vadd.f32 %v445, %v805
        %v807 = vpop.f32.mrb[0].mxu0
        %v808 = vadd.f32 %v445, %v807
        %v809 = vpop.f32.mrb[0].mxu0
        %v810 = vadd.f32 %v450, %v809
        %v811 = vpop.f32.mrb[0].mxu0
        %v812 = vadd.f32 %v450, %v811
        %813 = vmatprep.mubr.bf16.mxu0 0
        %814 = vmatmul.mubr.bf16.gmra.mrb[0].mxu0 %v650
        %v815 = vpop.f32.mrb[0].mxu0
        %v816 = vadd.f32 %v455, %v815
        %v817 = vpop.f32.mrb[0].mxu0
        %v818 = vadd.f32 %v455, %v817
        %v819 = vpop.f32.mrb[0].mxu0
        %v820 = vadd.f32 %v460, %v819
        %v821 = vpop.f32.mrb[0].mxu0
        %v822 = vadd.f32 %v460, %v821
        %823 = vmatprep.mubr.bf16.mxu0 0
        %824 = vmatmul.mubr.bf16.gmra.mrb[0].mxu0 %v653
        %v825 = vpop.f32.mrb[0].mxu0
        %v826 = vadd.f32 %v465, %v825
        %v827 = vpop.f32.mrb[0].mxu0
        %v828 = vadd.f32 %v465, %v827
        %v829 = vpop.f32.mrb[0].mxu0
        %v830 = vadd.f32 %v470, %v829
        %v831 = vpop.f32.mrb[0].mxu0
        %v832 = vadd.f32 %v470, %v831
        %833 = vmatprep.mubr.bf16.mxu0 0
        %834 = vmatmul.mubr.bf16.gmra.mrb[0].mxu0 %v656
        %v835 = vpop.f32.mrb[0].mxu0
        %v836 = vadd.f32 %v475, %v835
        %v837 = vpop.f32.mrb[0].mxu0
        %v838 = vadd.f32 %v475, %v837
        %v839 = vpop.f32.mrb[0].mxu0
        %v840 = vadd.f32 %v480, %v839
        %v841 = vpop.f32.mrb[0].mxu0
        %v842 = vadd.f32 %v480, %v841
        %843 = vmatprep.mubr.bf16.mxu0 0
        %844 = vmatmul.mubr.bf16.gmra.mrb[0].mxu0 %v659
        %v845 = vpop.f32.mrb[0].mxu0
        %v846 = vadd.f32 %v485, %v845
        %v847 = vpop.f32.mrb[0].mxu0
        %v848 = vadd.f32 %v485, %v847
        %v849 = vpop.f32.mrb[0].mxu0
        %v850 = vadd.f32 %v490, %v849
        %v851 = vpop.f32.mrb[0].mxu0
        %v852 = vadd.f32 %v490, %v851
        %853 = vdwg.mxu0
        %v854 = vsub.f32 0.0, %v776
        %v855 = vsub.f32 0.0, %v778
        %v856 = vsub.f32 0.0, %v780
        %v857 = vsub.f32 0.0, %v782
        %v858 = vsub.f32 0.0, %v786
        %v859 = vsub.f32 0.0, %v788
        %v860 = vsub.f32 0.0, %v790
        %v861 = vsub.f32 0.0, %v792
        %v862 = vsub.f32 0.0, %v796
        %v863 = vsub.f32 0.0, %v798
        %v864 = vsub.f32 0.0, %v800
        %v865 = vsub.f32 0.0, %v802
        %v866 = vsub.f32 0.0, %v806
        %v867 = vsub.f32 0.0, %v808
        %v868 = vsub.f32 0.0, %v810
        %v869 = vsub.f32 0.0, %v812
        %v870 = vsub.f32 0.0, %v816
        %v871 = vsub.f32 0.0, %v818
        %v872 = vsub.f32 0.0, %v820
        %v873 = vsub.f32 0.0, %v822
        %v874 = vsub.f32 0.0, %v826
        %v875 = vsub.f32 0.0, %v828
        %v876 = vsub.f32 0.0, %v830
        %v877 = vsub.f32 0.0, %v832
        %v878 = vsub.f32 0.0, %v836
        %v879 = vsub.f32 0.0, %v838
        %v880 = vsub.f32 0.0, %v840
        %v881 = vsub.f32 0.0, %v842
        %v882 = vsub.f32 0.0, %v846
        %v883 = vsub.f32 0.0, %v848
        %v884 = vsub.f32 0.0, %v850
        %v885 = vsub.f32 0.0, %v852
        %v886 = vmul.f32 %v854, 1.442695
        %v887 = vpow.pop %v886
        %v888 = vmul.f32 %v855, 1.442695
        %v889 = vpow.pop %v888
        %v890 = vmul.f32 %v856, 1.442695
        %v891 = vpow.pop %v890
        %v892 = vmul.f32 %v857, 1.442695
        %v893 = vpow.pop %v892
        %v894 = vmul.f32 %v858, 1.442695
        %v895 = vpow.pop %v894
        %v896 = vmul.f32 %v859, 1.442695
        %v897 = vpow.pop %v896
        %v898 = vmul.f32 %v860, 1.442695
        %v899 = vpow.pop %v898
        %v900 = vmul.f32 %v861, 1.442695
        %v901 = vpow.pop %v900
        %v902 = vmul.f32 %v862, 1.442695
        %v903 = vpow.pop %v902
        %v904 = vmul.f32 %v863, 1.442695
        %v905 = vpow.pop %v904
        %v906 = vmul.f32 %v864, 1.442695
        %v907 = vpow.pop %v906
        %v908 = vmul.f32 %v865, 1.442695
        %v909 = vpow.pop %v908
        %v910 = vmul.f32 %v866, 1.442695
        %v911 = vpow.pop %v910
        %v912 = vmul.f32 %v867, 1.442695
        %v913 = vpow.pop %v912
        %v914 = vmul.f32 %v868, 1.442695
        %v915 = vpow.pop %v914
        %v916 = vmul.f32 %v869, 1.442695
        %v917 = vpow.pop %v916
        %v918 = vmul.f32 %v870, 1.442695
        %v919 = vpow.pop %v918
        %v920 = vmul.f32 %v871, 1.442695
        %v921 = vpow.pop %v920
        %v922 = vmul.f32 %v872, 1.442695
        %v923 = vpow.pop %v922
        %v924 = vmul.f32 %v873, 1.442695
        %v925 = vpow.pop %v924
        %v926 = vmul.f32 %v874, 1.442695
        %v927 = vpow.pop %v926
        %v928 = vmul.f32 %v875, 1.442695
        %v929 = vpow.pop %v928
        %v930 = vmul.f32 %v876, 1.442695
        %v931 = vpow.pop %v930
        %v932 = vmul.f32 %v877, 1.442695
        %v933 = vpow.pop %v932
        %v934 = vmul.f32 %v878, 1.442695
        %v935 = vpow.pop %v934
        %v936 = vmul.f32 %v879, 1.442695
        %v937 = vpow.pop %v936
        %v938 = vmul.f32 %v880, 1.442695
        %v939 = vpow.pop %v938
        %v940 = vmul.f32 %v881, 1.442695
        %v941 = vpow.pop %v940
        %v942 = vmul.f32 %v882, 1.442695
        %v943 = vpow.pop %v942
        %v944 = vmul.f32 %v883, 1.442695
        %v945 = vpow.pop %v944
        %v946 = vmul.f32 %v884, 1.442695
        %v947 = vpow.pop %v946
        %v948 = vmul.f32 %v885, 1.442695
        %v949 = vpow.pop %v948
        %v950 = vadd.f32 %v887, 1.0
        %v951 = vadd.f32 %v889, 1.0
        %v952 = vadd.f32 %v891, 1.0
        %v953 = vadd.f32 %v893, 1.0
        %v954 = vadd.f32 %v895, 1.0
        %v955 = vadd.f32 %v897, 1.0
        %v956 = vadd.f32 %v899, 1.0
        %v957 = vadd.f32 %v901, 1.0
        %v958 = vadd.f32 %v903, 1.0
        %v959 = vadd.f32 %v905, 1.0
        %v960 = vadd.f32 %v907, 1.0
        %v961 = vadd.f32 %v909, 1.0
        %v962 = vadd.f32 %v911, 1.0
        %v963 = vadd.f32 %v913, 1.0
        %v964 = vadd.f32 %v915, 1.0
        %v965 = vadd.f32 %v917, 1.0
        %v966 = vadd.f32 %v919, 1.0
        %v967 = vadd.f32 %v921, 1.0
        %v968 = vadd.f32 %v923, 1.0
        %v969 = vadd.f32 %v925, 1.0
        %v970 = vadd.f32 %v927, 1.0
        %v971 = vadd.f32 %v929, 1.0
        %v972 = vadd.f32 %v931, 1.0
        %v973 = vadd.f32 %v933, 1.0
        %v974 = vadd.f32 %v935, 1.0
        %v975 = vadd.f32 %v937, 1.0
        %v976 = vadd.f32 %v939, 1.0
        %v977 = vadd.f32 %v941, 1.0
        %v978 = vadd.f32 %v943, 1.0
        %v979 = vadd.f32 %v945, 1.0
        %v980 = vadd.f32 %v947, 1.0
        %v981 = vadd.f32 %v949, 1.0
        %v982 = vrcp.pop %v950
        %v983 = vrcp.pop %v951
        %v984 = vrcp.pop %v952
        %v985 = vrcp.pop %v953
        %v986 = vrcp.pop %v954
        %v987 = vrcp.pop %v955
        %v988 = vrcp.pop %v956
        %v989 = vrcp.pop %v957
        %v990 = vrcp.pop %v958
        %v991 = vrcp.pop %v959
        %v992 = vrcp.pop %v960
        %v993 = vrcp.pop %v961
        %v994 = vrcp.pop %v962
        %v995 = vrcp.pop %v963
        %v996 = vrcp.pop %v964
        %v997 = vrcp.pop %v965
        %v998 = vrcp.pop %v966
        %v999 = vrcp.pop %v967
        %v1000 = vrcp.pop %v968
        %v1001 = vrcp.pop %v969
        %v1002 = vrcp.pop %v970
        %v1003 = vrcp.pop %v971
        %v1004 = vrcp.pop %v972
        %v1005 = vrcp.pop %v973
        %v1006 = vrcp.pop %v974
        %v1007 = vrcp.pop %v975
        %v1008 = vrcp.pop %v976
        %v1009 = vrcp.pop %v977
        %v1010 = vrcp.pop %v978
        %v1011 = vrcp.pop %v979
        %v1012 = vrcp.pop %v980
        %v1013 = vrcp.pop %v981
        %v1014 = vmul.f32 %v696, %v982
        %v1015 = vmul.f32 %v698, %v983
        %v1016 = vmul.f32 %v700, %v984
        %v1017 = vmul.f32 %v702, %v985
        %v1018 = vmul.f32 %v706, %v986
        %v1019 = vmul.f32 %v708, %v987
        %v1020 = vmul.f32 %v710, %v988
        %v1021 = vmul.f32 %v712, %v989
        %v1022 = vmul.f32 %v716, %v990
        %v1023 = vmul.f32 %v718, %v991
        %v1024 = vmul.f32 %v720, %v992
        %v1025 = vmul.f32 %v722, %v993
        %v1026 = vmul.f32 %v726, %v994
        %v1027 = vmul.f32 %v728, %v995
        %v1028 = vmul.f32 %v730, %v996
        %v1029 = vmul.f32 %v732, %v997
        %v1030 = vmul.f32 %v736, %v998
        %v1031 = vmul.f32 %v738, %v999
        %v1032 = vmul.f32 %v740, %v1000
        %v1033 = vmul.f32 %v742, %v1001
        %v1034 = vmul.f32 %v746, %v1002
        %v1035 = vmul.f32 %v748, %v1003
        %v1036 = vmul.f32 %v750, %v1004
        %v1037 = vmul.f32 %v752, %v1005
        %v1038 = vmul.f32 %v756, %v1006
        %v1039 = vmul.f32 %v758, %v1007
        %v1040 = vmul.f32 %v760, %v1008
        %v1041 = vmul.f32 %v762, %v1009
        %v1042 = vmul.f32 %v766, %v1010
        %v1043 = vmul.f32 %v768, %v1011
        %v1044 = vmul.f32 %v770, %v1012
        %v1045 = vmul.f32 %v772, %v1013
        %v1046 = vpack.c.bf16 %v1016, %v1014
        %v1047 = vpack.c.bf16 %v1017, %v1015
        %v1048 = vpack.c.bf16 %v1020, %v1018
        %v1049 = vpack.c.bf16 %v1021, %v1019
        %v1050 = vpack.c.bf16 %v1024, %v1022
        %v1051 = vpack.c.bf16 %v1025, %v1023
        %v1052 = vpack.c.bf16 %v1028, %v1026
        %v1053 = vpack.c.bf16 %v1029, %v1027
        %v1054 = vpack.c.bf16 %v1032, %v1030
        %v1055 = vpack.c.bf16 %v1033, %v1031
        %v1056 = vpack.c.bf16 %v1036, %v1034
        %v1057 = vpack.c.bf16 %v1037, %v1035
        %v1058 = vpack.c.bf16 %v1040, %v1038
        %v1059 = vpack.c.bf16 %v1041, %v1039
        %v1060 = vpack.c.bf16 %v1044, %v1042
        %v1061 = vpack.c.bf16 %v1045, %v1043
        %v1062 = vld [vmem:[%s3] sm:$0xf]
        %v1063 = vld [vmem:[%s3 + $0x4] sm:$0xf]
        %v1064 = vld [vmem:[%s3 + $0x8] sm:$0xf]
        %v1065 = vld [vmem:[%s3 + $0xc] sm:$0xf]
        %v1066 = vld [vmem:[%s3 + $0x10] sm:$0xf]
        %v1067 = vld [vmem:[%s3 + $0x14] sm:$0xf]
        %v1068 = vld [vmem:[%s3 + $0x18] sm:$0xf]
        %v1069 = vld [vmem:[%s3 + $0x1c] sm:$0xf]
        %v1070 = vld [vmem:[%s4] sm:$0xff]
        %v1071 = vld [vmem:[%s4 + $0x8] sm:$0xff]
        %v1072 = vld [vmem:[%s4 + $0x10] sm:$0xff]
        %v1073 = vld [vmem:[%s4 + $0x18] sm:$0xff]
        %v1074 = vld [vmem:[%s4 + $0x20] sm:$0xff]
        %v1075 = vld [vmem:[%s4 + $0x28] sm:$0xff]
        %v1076 = vld [vmem:[%s4 + $0x30] sm:$0xff]
        %v1077 = vld [vmem:[%s4 + $0x38] sm:$0xff]
        %1079 = vset.pattern.permute.xlu0 0
        %1080 = vperm.xlu0 %1079, %v1070
        %v1081 = vpop.permute.xlu0 %1080
        %1084 = vset.pattern.permute.xlu0 0
        %1085 = vperm.xlu0 %1084, %v1071
        %v1086 = vpop.permute.xlu0 %1085
        %1089 = vset.pattern.permute.xlu0 0
        %1090 = vperm.xlu0 %1089, %v1072
        %v1091 = vpop.permute.xlu0 %1090
        %1094 = vset.pattern.permute.xlu0 0
        %1095 = vperm.xlu0 %1094, %v1073
        %v1096 = vpop.permute.xlu0 %1095
        %1099 = vset.pattern.permute.xlu0 0
        %1100 = vperm.xlu0 %1099, %v1074
        %v1101 = vpop.permute.xlu0 %1100
        %1104 = vset.pattern.permute.xlu0 0
        %1105 = vperm.xlu0 %1104, %v1075
        %v1106 = vpop.permute.xlu0 %1105
        %1109 = vset.pattern.permute.xlu0 0
        %1110 = vperm.xlu0 %1109, %v1076
        %v1111 = vpop.permute.xlu0 %1110
        %1114 = vset.pattern.permute.xlu0 0
        %1115 = vperm.xlu0 %1114, %v1077
        %v1116 = vpop.permute.xlu0 %1115
        %v1126 = vunpack.c.l.b16 %v1062
        %v1127 = vunpack.c.l.b16 %v1063
        %v1128 = vunpack.c.l.b16 %v1064
        %v1129 = vunpack.c.l.b16 %v1065
        %v1130 = vunpack.c.l.b16 %v1066
        %v1131 = vunpack.c.l.b16 %v1067
        %v1132 = vunpack.c.l.b16 %v1068
        %v1133 = vunpack.c.l.b16 %v1069
        %v1134 = vpack.c.b16 %v1127, %v1126
        %v1135 = vpack.c.b16 %v1129, %v1128
        %v1136 = vpack.c.b16 %v1131, %v1130
        %v1137 = vpack.c.b16 %v1133, %v1132
        %1142 = vmatprep.subr.bf16.mxu0 %v1047
        %1143 = vmatpush1.bf16.msra.mxu0 %v1046
        %1144 = vmatprep.subr.bf16.mxu0 %v1049
        %1145 = vmatpush1.bf16.msra.mxu0 %v1048
        %1146 = vmatprep.subr.bf16.mxu0 %v1051
        %1147 = vmatpush1.bf16.msra.mxu0 %v1050
        %1148 = vmatprep.subr.bf16.mxu0 %v1053
        %1149 = vmatpush1.bf16.msra.mxu0 %v1052
        %1150 = vmatprep.subr.bf16.mxu0 %v1055
        %1151 = vmatpush1.bf16.msra.mxu0 %v1054
        %1152 = vmatprep.subr.bf16.mxu0 %v1057
        %1153 = vmatpush1.bf16.msra.mxu0 %v1056
        %1154 = vmatprep.subr.bf16.mxu0 %v1059
        %1155 = vmatpush1.bf16.msra.mxu0 %v1058
        %1156 = vmatprep.subr.bf16.mxu0 %v1061
        %1157 = vmatpush1.bf16.msra.mxu0 %v1060
        %1158 = vmatprep.subr.bf16.mxu0 0
        %1159 = vmatpush1.bf16.msra.mxu0 0
        %1160 = vmatprep.subr.bf16.mxu0 0
        %1161 = vmatpush1.bf16.msra.mxu0 0
        %1162 = vmatprep.subr.bf16.mxu0 0
        %1163 = vmatpush1.bf16.msra.mxu0 0
        %1164 = vmatprep.subr.bf16.mxu0 0
        %1165 = vmatpush1.bf16.msra.mxu0 0
        %1166 = vmatprep.subr.bf16.mxu0 0
        %1167 = vmatpush1.bf16.msra.mxu0 0
        %1168 = vmatprep.subr.bf16.mxu0 0
        %1169 = vmatpush1.bf16.msra.mxu0 0
        %1170 = vmatprep.subr.bf16.mxu0 0
        %1171 = vmatpush1.bf16.msra.mxu0 0
        %1172 = vmatprep.subr.bf16.mxu0 0
        %1173 = vmatpush1.bf16.msra.mxu0 0
        %1174 = vmatprep.mubr.bf16.mxu0 0
        %1175 = vmatmul.mubr.bf16.gmra.mrb[0].mxu0 %v1134
        %v1176 = vpop.f32.mrb[0].mxu0
        %v1177 = vadd.f32 %v1081, %v1176
        %v1178 = vpop.f32.mrb[0].mxu0
        %v1179 = vadd.f32 %v1081, %v1178
        %v1180 = vpop.f32.mrb[0].mxu0
        %v1181 = vadd.f32 %v1086, %v1180
        %v1182 = vpop.f32.mrb[0].mxu0
        %v1183 = vadd.f32 %v1086, %v1182
        %1184 = vmatprep.mubr.bf16.mxu0 0
        %1185 = vmatmul.mubr.bf16.gmra.mrb[0].mxu0 %v1135
        %v1186 = vpop.f32.mrb[0].mxu0
        %v1187 = vadd.f32 %v1091, %v1186
        %v1188 = vpop.f32.mrb[0].mxu0
        %v1189 = vadd.f32 %v1091, %v1188
        %v1190 = vpop.f32.mrb[0].mxu0
        %v1191 = vadd.f32 %v1096, %v1190
        %v1192 = vpop.f32.mrb[0].mxu0
        %v1193 = vadd.f32 %v1096, %v1192
        %1194 = vmatprep.mubr.bf16.mxu0 0
        %1195 = vmatmul.mubr.bf16.gmra.mrb[0].mxu0 %v1136
        %v1196 = vpop.f32.mrb[0].mxu0
        %v1197 = vadd.f32 %v1101, %v1196
        %v1198 = vpop.f32.mrb[0].mxu0
        %v1199 = vadd.f32 %v1101, %v1198
        %v1200 = vpop.f32.mrb[0].mxu0
        %v1201 = vadd.f32 %v1106, %v1200
        %v1202 = vpop.f32.mrb[0].mxu0
        %v1203 = vadd.f32 %v1106, %v1202
        %1204 = vmatprep.mubr.bf16.mxu0 0
        %1205 = vmatmul.mubr.bf16.gmra.mrb[0].mxu0 %v1137
        %v1206 = vpop.f32.mrb[0].mxu0
        %v1207 = vadd.f32 %v1111, %v1206
        %v1208 = vpop.f32.mrb[0].mxu0
        %v1209 = vadd.f32 %v1111, %v1208
        %v1210 = vpop.f32.mrb[0].mxu0
        %v1211 = vadd.f32 %v1116, %v1210
        %v1212 = vpop.f32.mrb[0].mxu0
        %v1213 = vadd.f32 %v1116, %v1212
        %1214 = vdwg.mxu0
        %v1215 = vpack.c.bf16 %v1181, %v1177
        %v1216 = vpack.c.bf16 %v1183, %v1179
        %v1217 = vpack.c.bf16 %v1191, %v1187
        %v1218 = vpack.c.bf16 %v1193, %v1189
        %v1219 = vpack.c.bf16 %v1201, %v1197
        %v1220 = vpack.c.bf16 %v1203, %v1199
        %v1221 = vpack.c.bf16 %v1211, %v1207
        %v1222 = vpack.c.bf16 %v1213, %v1209
        %v1231 = vunpack.c.l.b16 %v1215
        %v1232 = vunpack.c.l.b16 %v1216
        %v1233 = vunpack.c.h.b16 %v1215
        %v1234 = vunpack.c.h.b16 %v1216
        %v1235 = vunpack.c.l.b16 %v1217
        %v1236 = vunpack.c.l.b16 %v1218
        %v1237 = vunpack.c.h.b16 %v1217
        %v1238 = vunpack.c.h.b16 %v1218
        %v1239 = vunpack.c.l.b16 %v1219
        %v1240 = vunpack.c.l.b16 %v1220
        %v1241 = vunpack.c.h.b16 %v1219
        %v1242 = vunpack.c.h.b16 %v1220
        %v1243 = vunpack.c.l.b16 %v1221
        %v1244 = vunpack.c.l.b16 %v1222
        %v1245 = vunpack.c.h.b16 %v1221
        %v1246 = vunpack.c.h.b16 %v1222
        %v1247 = vpack.c.b16 %v1232, %v1231
        %v1248 = vpack.c.b16 %v1234, %v1233
        %v1249 = vpack.c.b16 %v1236, %v1235
        %v1250 = vpack.c.b16 %v1238, %v1237
        %v1251 = vpack.c.b16 %v1240, %v1239
        %v1252 = vpack.c.b16 %v1242, %v1241
        %v1253 = vpack.c.b16 %v1244, %v1243
        %v1254 = vpack.c.b16 %v1246, %v1245
        %1263 = vst [vmem:[%s245] sm:$0xff] %v1247
        %1264 = vst [vmem:[%s245 + $0x8] sm:$0xff] %v1248
        %1265 = vst [vmem:[%s245 + $0x10] sm:$0xff] %v1249
        %1266 = vst [vmem:[%s245 + $0x18] sm:$0xff] %v1250
        %1267 = vst [vmem:[%s245 + $0x20] sm:$0xff] %v1251
        %1268 = vst [vmem:[%s245 + $0x28] sm:$0xff] %v1252
        %1269 = vst [vmem:[%s245 + $0x30] sm:$0xff] %v1253
        %1270 = vst [vmem:[%s245 + $0x38] sm:$0xff] %v1254
        %s1271 = scalar_lea.vmem %s255, 64
        %v1272 = vld [vmem:[%s1271] sm:$0xff]
        %v1273 = vld [vmem:[%s1271 + $0x8] sm:$0xff]
        %v1274 = vld [vmem:[%s1271 + $0x10] sm:$0xff]
        %v1275 = vld [vmem:[%s1271 + $0x18] sm:$0xff]
        %v1276 = vld [vmem:[%s1271 + $0x20] sm:$0xff]
        %v1277 = vld [vmem:[%s1271 + $0x28] sm:$0xff]
        %v1278 = vld [vmem:[%s1271 + $0x30] sm:$0xff]
        %v1279 = vld [vmem:[%s1271 + $0x38] sm:$0xff]
        %v1280 = vld [vmem:[%s1] sm:$0xf]
        %v1281 = vld [vmem:[%s1 + $0x4] sm:$0xf]
        %v1282 = vld [vmem:[%s1 + $0x8] sm:$0xf]
        %v1283 = vld [vmem:[%s1 + $0xc] sm:$0xf]
        %v1284 = vld [vmem:[%s1 + $0x10] sm:$0xf]
        %v1285 = vld [vmem:[%s1 + $0x14] sm:$0xf]
        %v1286 = vld [vmem:[%s1 + $0x18] sm:$0xf]
        %v1287 = vld [vmem:[%s1 + $0x1c] sm:$0xf]
        %v1288 = vld [vmem:[%s1 + $0x20] sm:$0xf]
        %v1289 = vld [vmem:[%s1 + $0x24] sm:$0xf]
        %v1290 = vld [vmem:[%s1 + $0x28] sm:$0xf]
        %v1291 = vld [vmem:[%s1 + $0x2c] sm:$0xf]
        %v1292 = vld [vmem:[%s1 + $0x30] sm:$0xf]
        %v1293 = vld [vmem:[%s1 + $0x34] sm:$0xf]
        %v1294 = vld [vmem:[%s1 + $0x38] sm:$0xf]
        %v1295 = vld [vmem:[%s1 + $0x3c] sm:$0xf]
        %v1296 = vld [vmem:[%s1 + $0x40] sm:$0xf]
        %v1297 = vld [vmem:[%s1 + $0x44] sm:$0xf]
        %v1298 = vld [vmem:[%s1 + $0x48] sm:$0xf]
        %v1299 = vld [vmem:[%s1 + $0x4c] sm:$0xf]
        %v1300 = vld [vmem:[%s1 + $0x50] sm:$0xf]
        %v1301 = vld [vmem:[%s1 + $0x54] sm:$0xf]
        %v1302 = vld [vmem:[%s1 + $0x58] sm:$0xf]
        %v1303 = vld [vmem:[%s1 + $0x5c] sm:$0xf]
        %v1304 = vld [vmem:[%s1 + $0x60] sm:$0xf]
        %v1305 = vld [vmem:[%s1 + $0x64] sm:$0xf]
        %v1306 = vld [vmem:[%s1 + $0x68] sm:$0xf]
        %v1307 = vld [vmem:[%s1 + $0x6c] sm:$0xf]
        %v1308 = vld [vmem:[%s1 + $0x70] sm:$0xf]
        %v1309 = vld [vmem:[%s1 + $0x74] sm:$0xf]
        %v1310 = vld [vmem:[%s1 + $0x78] sm:$0xf]
        %v1311 = vld [vmem:[%s1 + $0x7c] sm:$0xf]
        %v1312 = vld [vmem:[%s2] sm:$0xff]
        %v1313 = vld [vmem:[%s2 + $0x8] sm:$0xff]
        %v1314 = vld [vmem:[%s2 + $0x10] sm:$0xff]
        %v1315 = vld [vmem:[%s2 + $0x18] sm:$0xff]
        %v1316 = vld [vmem:[%s2 + $0x20] sm:$0xff]
        %v1317 = vld [vmem:[%s2 + $0x28] sm:$0xff]
        %v1318 = vld [vmem:[%s2 + $0x30] sm:$0xff]
        %v1319 = vld [vmem:[%s2 + $0x38] sm:$0xff]
        %v1320 = vld [vmem:[%s2 + $0x40] sm:$0xff]
        %v1321 = vld [vmem:[%s2 + $0x48] sm:$0xff]
        %v1322 = vld [vmem:[%s2 + $0x50] sm:$0xff]
        %v1323 = vld [vmem:[%s2 + $0x58] sm:$0xff]
        %v1324 = vld [vmem:[%s2 + $0x60] sm:$0xff]
        %v1325 = vld [vmem:[%s2 + $0x68] sm:$0xff]
        %v1326 = vld [vmem:[%s2 + $0x70] sm:$0xff]
        %v1327 = vld [vmem:[%s2 + $0x78] sm:$0xff]
        %v1328 = vld [vmem:[%s2 + $0x80] sm:$0xff]
        %v1329 = vld [vmem:[%s2 + $0x88] sm:$0xff]
        %v1330 = vld [vmem:[%s2 + $0x90] sm:$0xff]
        %v1331 = vld [vmem:[%s2 + $0x98] sm:$0xff]
        %v1332 = vld [vmem:[%s2 + $0xa0] sm:$0xff]
        %v1333 = vld [vmem:[%s2 + $0xa8] sm:$0xff]
        %v1334 = vld [vmem:[%s2 + $0xb0] sm:$0xff]
        %v1335 = vld [vmem:[%s2 + $0xb8] sm:$0xff]
        %v1336 = vld [vmem:[%s2 + $0xc0] sm:$0xff]
        %v1337 = vld [vmem:[%s2 + $0xc8] sm:$0xff]
        %v1338 = vld [vmem:[%s2 + $0xd0] sm:$0xff]
        %v1339 = vld [vmem:[%s2 + $0xd8] sm:$0xff]
        %v1340 = vld [vmem:[%s2 + $0xe0] sm:$0xff]
        %v1341 = vld [vmem:[%s2 + $0xe8] sm:$0xff]
        %v1342 = vld [vmem:[%s2 + $0xf0] sm:$0xff]
        %v1343 = vld [vmem:[%s2 + $0xf8] sm:$0xff]
        %1345 = vset.pattern.permute.xlu0 0
        %1346 = vperm.xlu0 %1345, %v1312
        %v1347 = vpop.permute.xlu0 %1346
        %1350 = vset.pattern.permute.xlu0 0
        %1351 = vperm.xlu0 %1350, %v1313
        %v1352 = vpop.permute.xlu0 %1351
        %1355 = vset.pattern.permute.xlu0 0
        %1356 = vperm.xlu0 %1355, %v1314
        %v1357 = vpop.permute.xlu0 %1356
        %1360 = vset.pattern.permute.xlu0 0
        %1361 = vperm.xlu0 %1360, %v1315
        %v1362 = vpop.permute.xlu0 %1361
        %1365 = vset.pattern.permute.xlu0 0
        %1366 = vperm.xlu0 %1365, %v1316
        %v1367 = vpop.permute.xlu0 %1366
        %1370 = vset.pattern.permute.xlu0 0
        %1371 = vperm.xlu0 %1370, %v1317
        %v1372 = vpop.permute.xlu0 %1371
        %1375 = vset.pattern.permute.xlu0 0
        %1376 = vperm.xlu0 %1375, %v1318
        %v1377 = vpop.permute.xlu0 %1376
        %1380 = vset.pattern.permute.xlu0 0
        %1381 = vperm.xlu0 %1380, %v1319
        %v1382 = vpop.permute.xlu0 %1381
        %1385 = vset.pattern.permute.xlu0 0
        %1386 = vperm.xlu0 %1385, %v1320
        %v1387 = vpop.permute.xlu0 %1386
        %1390 = vset.pattern.permute.xlu0 0
        %1391 = vperm.xlu0 %1390, %v1321
        %v1392 = vpop.permute.xlu0 %1391
        %1395 = vset.pattern.permute.xlu0 0
        %1396 = vperm.xlu0 %1395, %v1322
        %v1397 = vpop.permute.xlu0 %1396
        %1400 = vset.pattern.permute.xlu0 0
        %1401 = vperm.xlu0 %1400, %v1323
        %v1402 = vpop.permute.xlu0 %1401
        %1405 = vset.pattern.permute.xlu0 0
        %1406 = vperm.xlu0 %1405, %v1324
        %v1407 = vpop.permute.xlu0 %1406
        %1410 = vset.pattern.permute.xlu0 0
        %1411 = vperm.xlu0 %1410, %v1325
        %v1412 = vpop.permute.xlu0 %1411
        %1415 = vset.pattern.permute.xlu0 0
        %1416 = vperm.xlu0 %1415, %v1326
        %v1417 = vpop.permute.xlu0 %1416
        %1420 = vset.pattern.permute.xlu0 0
        %1421 = vperm.xlu0 %1420, %v1327
        %v1422 = vpop.permute.xlu0 %1421
        %1425 = vset.pattern.permute.xlu0 0
        %1426 = vperm.xlu0 %1425, %v1328
        %v1427 = vpop.permute.xlu0 %1426
        %1430 = vset.pattern.permute.xlu0 0
        %1431 = vperm.xlu0 %1430, %v1329
        %v1432 = vpop.permute.xlu0 %1431
        %1435 = vset.pattern.permute.xlu0 0
        %1436 = vperm.xlu0 %1435, %v1330
        %v1437 = vpop.permute.xlu0 %1436
        %1440 = vset.pattern.permute.xlu0 0
        %1441 = vperm.xlu0 %1440, %v1331
        %v1442 = vpop.permute.xlu0 %1441
        %1445 = vset.pattern.permute.xlu0 0
        %1446 = vperm.xlu0 %1445, %v1332
        %v1447 = vpop.permute.xlu0 %1446
        %1450 = vset.pattern.permute.xlu0 0
        %1451 = vperm.xlu0 %1450, %v1333
        %v1452 = vpop.permute.xlu0 %1451
        %1455 = vset.pattern.permute.xlu0 0
        %1456 = vperm.xlu0 %1455, %v1334
        %v1457 = vpop.permute.xlu0 %1456
        %1460 = vset.pattern.permute.xlu0 0
        %1461 = vperm.xlu0 %1460, %v1335
        %v1462 = vpop.permute.xlu0 %1461
        %1465 = vset.pattern.permute.xlu0 0
        %1466 = vperm.xlu0 %1465, %v1336
        %v1467 = vpop.permute.xlu0 %1466
        %1470 = vset.pattern.permute.xlu0 0
        %1471 = vperm.xlu0 %1470, %v1337
        %v1472 = vpop.permute.xlu0 %1471
        %1475 = vset.pattern.permute.xlu0 0
        %1476 = vperm.xlu0 %1475, %v1338
        %v1477 = vpop.permute.xlu0 %1476
        %1480 = vset.pattern.permute.xlu0 0
        %1481 = vperm.xlu0 %1480, %v1339
        %v1482 = vpop.permute.xlu0 %1481
        %1485 = vset.pattern.permute.xlu0 0
        %1486 = vperm.xlu0 %1485, %v1340
        %v1487 = vpop.permute.xlu0 %1486
        %1490 = vset.pattern.permute.xlu0 0
        %1491 = vperm.xlu0 %1490, %v1341
        %v1492 = vpop.permute.xlu0 %1491
        %1495 = vset.pattern.permute.xlu0 0
        %1496 = vperm.xlu0 %1495, %v1342
        %v1497 = vpop.permute.xlu0 %1496
        %1500 = vset.pattern.permute.xlu0 0
        %1501 = vperm.xlu0 %1500, %v1343
        %v1502 = vpop.permute.xlu0 %1501
        %v1536 = vunpack.c.l.b16 %v1280
        %v1537 = vunpack.c.l.b16 %v1281
        %v1538 = vunpack.c.l.b16 %v1282
        %v1539 = vunpack.c.l.b16 %v1283
        %v1540 = vunpack.c.l.b16 %v1284
        %v1541 = vunpack.c.l.b16 %v1285
        %v1542 = vunpack.c.l.b16 %v1286
        %v1543 = vunpack.c.l.b16 %v1287
        %v1544 = vunpack.c.l.b16 %v1288
        %v1545 = vunpack.c.l.b16 %v1289
        %v1546 = vunpack.c.l.b16 %v1290
        %v1547 = vunpack.c.l.b16 %v1291
        %v1548 = vunpack.c.l.b16 %v1292
        %v1549 = vunpack.c.l.b16 %v1293
        %v1550 = vunpack.c.l.b16 %v1294
        %v1551 = vunpack.c.l.b16 %v1295
        %v1552 = vunpack.c.l.b16 %v1296
        %v1553 = vunpack.c.l.b16 %v1297
        %v1554 = vunpack.c.l.b16 %v1298
        %v1555 = vunpack.c.l.b16 %v1299
        %v1556 = vunpack.c.l.b16 %v1300
        %v1557 = vunpack.c.l.b16 %v1301
        %v1558 = vunpack.c.l.b16 %v1302
        %v1559 = vunpack.c.l.b16 %v1303
        %v1560 = vunpack.c.l.b16 %v1304
        %v1561 = vunpack.c.l.b16 %v1305
        %v1562 = vunpack.c.l.b16 %v1306
        %v1563 = vunpack.c.l.b16 %v1307
        %v1564 = vunpack.c.l.b16 %v1308
        %v1565 = vunpack.c.l.b16 %v1309
        %v1566 = vunpack.c.l.b16 %v1310
        %v1567 = vunpack.c.l.b16 %v1311
        %v1568 = vpack.c.b16 %v1537, %v1536
        %v1569 = vpack.c.b16 %v1539, %v1538
        %v1570 = vpack.c.b16 %v1541, %v1540
        %v1571 = vpack.c.b16 %v1543, %v1542
        %v1572 = vpack.c.b16 %v1545, %v1544
        %v1573 = vpack.c.b16 %v1547, %v1546
        %v1574 = vpack.c.b16 %v1549, %v1548
        %v1575 = vpack.c.b16 %v1551, %v1550
        %v1576 = vpack.c.b16 %v1553, %v1552
        %v1577 = vpack.c.b16 %v1555, %v1554
        %v1578 = vpack.c.b16 %v1557, %v1556
        %v1579 = vpack.c.b16 %v1559, %v1558
        %v1580 = vpack.c.b16 %v1561, %v1560
        %v1581 = vpack.c.b16 %v1563, %v1562
        %v1582 = vpack.c.b16 %v1565, %v1564
        %v1583 = vpack.c.b16 %v1567, %v1566
        %v1592 = vunpack.c.l.b16 %v1272
        %v1593 = vunpack.c.h.b16 %v1272
        %v1594 = vunpack.c.l.b16 %v1273
        %v1595 = vunpack.c.h.b16 %v1273
        %v1596 = vunpack.c.l.b16 %v1274
        %v1597 = vunpack.c.h.b16 %v1274
        %v1598 = vunpack.c.l.b16 %v1275
        %v1599 = vunpack.c.h.b16 %v1275
        %v1600 = vunpack.c.l.b16 %v1276
        %v1601 = vunpack.c.h.b16 %v1276
        %v1602 = vunpack.c.l.b16 %v1277
        %v1603 = vunpack.c.h.b16 %v1277
        %v1604 = vunpack.c.l.b16 %v1278
        %v1605 = vunpack.c.h.b16 %v1278
        %v1606 = vunpack.c.l.b16 %v1279
        %v1607 = vunpack.c.h.b16 %v1279
        %v1608 = vpack.c.b16 %v1594, %v1592
        %v1609 = vpack.c.b16 %v1595, %v1593
        %v1610 = vpack.c.b16 %v1598, %v1596
        %v1611 = vpack.c.b16 %v1599, %v1597
        %v1612 = vpack.c.b16 %v1602, %v1600
        %v1613 = vpack.c.b16 %v1603, %v1601
        %v1614 = vpack.c.b16 %v1606, %v1604
        %v1615 = vpack.c.b16 %v1607, %v1605
        %v1625 = vsel %vm612, %v1568, 0
        %v1628 = vsel %vm612, %v1569, 0
        %v1631 = vsel %vm612, %v1570, 0
        %v1634 = vsel %vm612, %v1571, 0
        %v1637 = vsel %vm612, %v1572, 0
        %v1640 = vsel %vm612, %v1573, 0
        %v1643 = vsel %vm612, %v1574, 0
        %v1646 = vsel %vm612, %v1575, 0
        %v1649 = vsel %vm612, %v1576, 0
        %v1652 = vsel %vm612, %v1577, 0
        %v1655 = vsel %vm612, %v1578, 0
        %v1658 = vsel %vm612, %v1579, 0
        %v1661 = vsel %vm612, %v1580, 0
        %v1664 = vsel %vm612, %v1581, 0
        %v1667 = vsel %vm612, %v1582, 0
        %v1670 = vsel %vm612, %v1583, 0
        %1672 = vmatprep.subr.bf16.mxu0 %v1609
        %1673 = vmatpush1.bf16.msra.mxu0 %v1608
        %1674 = vmatprep.subr.bf16.mxu0 %v1611
        %1675 = vmatpush1.bf16.msra.mxu0 %v1610
        %1676 = vmatprep.subr.bf16.mxu0 %v1613
        %1677 = vmatpush1.bf16.msra.mxu0 %v1612
        %1678 = vmatprep.subr.bf16.mxu0 %v1615
        %1679 = vmatpush1.bf16.msra.mxu0 %v1614
        %1680 = vmatprep.subr.bf16.mxu0 0
        %1681 = vmatpush1.bf16.msra.mxu0 0
        %1682 = vmatprep.subr.bf16.mxu0 0
        %1683 = vmatpush1.bf16.msra.mxu0 0
        %1684 = vmatprep.subr.bf16.mxu0 0
        %1685 = vmatpush1.bf16.msra.mxu0 0
        %1686 = vmatprep.subr.bf16.mxu0 0
        %1687 = vmatpush1.bf16.msra.mxu0 0
        %1688 = vmatprep.subr.bf16.mxu0 0
        %1689 = vmatpush1.bf16.msra.mxu0 0
        %1690 = vmatprep.subr.bf16.mxu0 0
        %1691 = vmatpush1.bf16.msra.mxu0 0
        %1692 = vmatprep.subr.bf16.mxu0 0
        %1693 = vmatpush1.bf16.msra.mxu0 0
        %1694 = vmatprep.subr.bf16.mxu0 0
        %1695 = vmatpush1.bf16.msra.mxu0 0
        %1696 = vmatprep.subr.bf16.mxu0 0
        %1697 = vmatpush1.bf16.msra.mxu0 0
        %1698 = vmatprep.subr.bf16.mxu0 0
        %1699 = vmatpush1.bf16.msra.mxu0 0
        %1700 = vmatprep.subr.bf16.mxu0 0
        %1701 = vmatpush1.bf16.msra.mxu0 0
        %1702 = vmatprep.subr.bf16.mxu0 0
        %1703 = vmatpush1.bf16.msra.mxu0 0
        %1704 = vmatprep.mubr.bf16.mxu0 0
        %1705 = vmatmul.mubr.bf16.gmra.mrb[0].mxu0 %v1625
        %v1706 = vpop.f32.mrb[0].mxu0
        %v1707 = vadd.f32 %v1347, %v1706
        %v1708 = vpop.f32.mrb[0].mxu0
        %v1709 = vadd.f32 %v1347, %v1708
        %v1710 = vpop.f32.mrb[0].mxu0
        %v1711 = vadd.f32 %v1352, %v1710
        %v1712 = vpop.f32.mrb[0].mxu0
        %v1713 = vadd.f32 %v1352, %v1712
        %1714 = vmatprep.mubr.bf16.mxu0 0
        %1715 = vmatmul.mubr.bf16.gmra.mrb[0].mxu0 %v1628
        %v1716 = vpop.f32.mrb[0].mxu0
        %v1717 = vadd.f32 %v1357, %v1716
        %v1718 = vpop.f32.mrb[0].mxu0
        %v1719 = vadd.f32 %v1357, %v1718
        %v1720 = vpop.f32.mrb[0].mxu0
        %v1721 = vadd.f32 %v1362, %v1720
        %v1722 = vpop.f32.mrb[0].mxu0
        %v1723 = vadd.f32 %v1362, %v1722
        %1724 = vmatprep.mubr.bf16.mxu0 0
        %1725 = vmatmul.mubr.bf16.gmra.mrb[0].mxu0 %v1631
        %v1726 = vpop.f32.mrb[0].mxu0
        %v1727 = vadd.f32 %v1367, %v1726
        %v1728 = vpop.f32.mrb[0].mxu0
        %v1729 = vadd.f32 %v1367, %v1728
        %v1730 = vpop.f32.mrb[0].mxu0
        %v1731 = vadd.f32 %v1372, %v1730
        %v1732 = vpop.f32.mrb[0].mxu0
        %v1733 = vadd.f32 %v1372, %v1732
        %1734 = vmatprep.mubr.bf16.mxu0 0
        %1735 = vmatmul.mubr.bf16.gmra.mrb[0].mxu0 %v1634
        %v1736 = vpop.f32.mrb[0].mxu0
        %v1737 = vadd.f32 %v1377, %v1736
        %v1738 = vpop.f32.mrb[0].mxu0
        %v1739 = vadd.f32 %v1377, %v1738
        %v1740 = vpop.f32.mrb[0].mxu0
        %v1741 = vadd.f32 %v1382, %v1740
        %v1742 = vpop.f32.mrb[0].mxu0
        %v1743 = vadd.f32 %v1382, %v1742
        %1744 = vmatprep.mubr.bf16.mxu0 0
        %1745 = vmatmul.mubr.bf16.gmra.mrb[0].mxu0 %v1637
        %v1746 = vpop.f32.mrb[0].mxu0
        %v1747 = vadd.f32 %v1387, %v1746
        %v1748 = vpop.f32.mrb[0].mxu0
        %v1749 = vadd.f32 %v1387, %v1748
        %v1750 = vpop.f32.mrb[0].mxu0
        %v1751 = vadd.f32 %v1392, %v1750
        %v1752 = vpop.f32.mrb[0].mxu0
        %v1753 = vadd.f32 %v1392, %v1752
        %1754 = vmatprep.mubr.bf16.mxu0 0
        %1755 = vmatmul.mubr.bf16.gmra.mrb[0].mxu0 %v1640
        %v1756 = vpop.f32.mrb[0].mxu0
        %v1757 = vadd.f32 %v1397, %v1756
        %v1758 = vpop.f32.mrb[0].mxu0
        %v1759 = vadd.f32 %v1397, %v1758
        %v1760 = vpop.f32.mrb[0].mxu0
        %v1761 = vadd.f32 %v1402, %v1760
        %v1762 = vpop.f32.mrb[0].mxu0
        %v1763 = vadd.f32 %v1402, %v1762
        %1764 = vmatprep.mubr.bf16.mxu0 0
        %1765 = vmatmul.mubr.bf16.gmra.mrb[0].mxu0 %v1643
        %v1766 = vpop.f32.mrb[0].mxu0
        %v1767 = vadd.f32 %v1407, %v1766
        %v1768 = vpop.f32.mrb[0].mxu0
        %v1769 = vadd.f32 %v1407, %v1768
        %v1770 = vpop.f32.mrb[0].mxu0
        %v1771 = vadd.f32 %v1412, %v1770
        %v1772 = vpop.f32.mrb[0].mxu0
        %v1773 = vadd.f32 %v1412, %v1772
        %1774 = vmatprep.mubr.bf16.mxu0 0
        %1775 = vmatmul.mubr.bf16.gmra.mrb[0].mxu0 %v1646
        %v1776 = vpop.f32.mrb[0].mxu0
        %v1777 = vadd.f32 %v1417, %v1776
        %v1778 = vpop.f32.mrb[0].mxu0
        %v1779 = vadd.f32 %v1417, %v1778
        %v1780 = vpop.f32.mrb[0].mxu0
        %v1781 = vadd.f32 %v1422, %v1780
        %v1782 = vpop.f32.mrb[0].mxu0
        %v1783 = vadd.f32 %v1422, %v1782
        %1784 = vmatprep.mubr.bf16.mxu0 0
        %1785 = vmatmul.mubr.bf16.gmra.mrb[0].mxu0 %v1649
        %v1786 = vpop.f32.mrb[0].mxu0
        %v1787 = vadd.f32 %v1427, %v1786
        %v1788 = vpop.f32.mrb[0].mxu0
        %v1789 = vadd.f32 %v1427, %v1788
        %v1790 = vpop.f32.mrb[0].mxu0
        %v1791 = vadd.f32 %v1432, %v1790
        %v1792 = vpop.f32.mrb[0].mxu0
        %v1793 = vadd.f32 %v1432, %v1792
        %1794 = vmatprep.mubr.bf16.mxu0 0
        %1795 = vmatmul.mubr.bf16.gmra.mrb[0].mxu0 %v1652
        %v1796 = vpop.f32.mrb[0].mxu0
        %v1797 = vadd.f32 %v1437, %v1796
        %v1798 = vpop.f32.mrb[0].mxu0
        %v1799 = vadd.f32 %v1437, %v1798
        %v1800 = vpop.f32.mrb[0].mxu0
        %v1801 = vadd.f32 %v1442, %v1800
        %v1802 = vpop.f32.mrb[0].mxu0
        %v1803 = vadd.f32 %v1442, %v1802
        %1804 = vmatprep.mubr.bf16.mxu0 0
        %1805 = vmatmul.mubr.bf16.gmra.mrb[0].mxu0 %v1655
        %v1806 = vpop.f32.mrb[0].mxu0
        %v1807 = vadd.f32 %v1447, %v1806
        %v1808 = vpop.f32.mrb[0].mxu0
        %v1809 = vadd.f32 %v1447, %v1808
        %v1810 = vpop.f32.mrb[0].mxu0
        %v1811 = vadd.f32 %v1452, %v1810
        %v1812 = vpop.f32.mrb[0].mxu0
        %v1813 = vadd.f32 %v1452, %v1812
        %1814 = vmatprep.mubr.bf16.mxu0 0
        %1815 = vmatmul.mubr.bf16.gmra.mrb[0].mxu0 %v1658
        %v1816 = vpop.f32.mrb[0].mxu0
        %v1817 = vadd.f32 %v1457, %v1816
        %v1818 = vpop.f32.mrb[0].mxu0
        %v1819 = vadd.f32 %v1457, %v1818
        %v1820 = vpop.f32.mrb[0].mxu0
        %v1821 = vadd.f32 %v1462, %v1820
        %v1822 = vpop.f32.mrb[0].mxu0
        %v1823 = vadd.f32 %v1462, %v1822
        %1824 = vmatprep.mubr.bf16.mxu0 0
        %1825 = vmatmul.mubr.bf16.gmra.mrb[0].mxu0 %v1661
        %v1826 = vpop.f32.mrb[0].mxu0
        %v1827 = vadd.f32 %v1467, %v1826
        %v1828 = vpop.f32.mrb[0].mxu0
        %v1829 = vadd.f32 %v1467, %v1828
        %v1830 = vpop.f32.mrb[0].mxu0
        %v1831 = vadd.f32 %v1472, %v1830
        %v1832 = vpop.f32.mrb[0].mxu0
        %v1833 = vadd.f32 %v1472, %v1832
        %1834 = vmatprep.mubr.bf16.mxu0 0
        %1835 = vmatmul.mubr.bf16.gmra.mrb[0].mxu0 %v1664
        %v1836 = vpop.f32.mrb[0].mxu0
        %v1837 = vadd.f32 %v1477, %v1836
        %v1838 = vpop.f32.mrb[0].mxu0
        %v1839 = vadd.f32 %v1477, %v1838
        %v1840 = vpop.f32.mrb[0].mxu0
        %v1841 = vadd.f32 %v1482, %v1840
        %v1842 = vpop.f32.mrb[0].mxu0
        %v1843 = vadd.f32 %v1482, %v1842
        %1844 = vmatprep.mubr.bf16.mxu0 0
        %1845 = vmatmul.mubr.bf16.gmra.mrb[0].mxu0 %v1667
        %v1846 = vpop.f32.mrb[0].mxu0
        %v1847 = vadd.f32 %v1487, %v1846
        %v1848 = vpop.f32.mrb[0].mxu0
        %v1849 = vadd.f32 %v1487, %v1848
        %v1850 = vpop.f32.mrb[0].mxu0
        %v1851 = vadd.f32 %v1492, %v1850
        %v1852 = vpop.f32.mrb[0].mxu0
        %v1853 = vadd.f32 %v1492, %v1852
        %1854 = vmatprep.mubr.bf16.mxu0 0
        %1855 = vmatmul.mubr.bf16.gmra.mrb[0].mxu0 %v1670
        %v1856 = vpop.f32.mrb[0].mxu0
        %v1857 = vadd.f32 %v1497, %v1856
        %v1858 = vpop.f32.mrb[0].mxu0
        %v1859 = vadd.f32 %v1497, %v1858
        %v1860 = vpop.f32.mrb[0].mxu0
        %v1861 = vadd.f32 %v1502, %v1860
        %v1862 = vpop.f32.mrb[0].mxu0
        %v1863 = vadd.f32 %v1502, %v1862
        %1864 = vdwg.mxu0
        %v1865 = vsub.f32 0.0, %v1787
        %v1866 = vsub.f32 0.0, %v1789
        %v1867 = vsub.f32 0.0, %v1791
        %v1868 = vsub.f32 0.0, %v1793
        %v1869 = vsub.f32 0.0, %v1797
        %v1870 = vsub.f32 0.0, %v1799
        %v1871 = vsub.f32 0.0, %v1801
        %v1872 = vsub.f32 0.0, %v1803
        %v1873 = vsub.f32 0.0, %v1807
        %v1874 = vsub.f32 0.0, %v1809
        %v1875 = vsub.f32 0.0, %v1811
        %v1876 = vsub.f32 0.0, %v1813
        %v1877 = vsub.f32 0.0, %v1817
        %v1878 = vsub.f32 0.0, %v1819
        %v1879 = vsub.f32 0.0, %v1821
        %v1880 = vsub.f32 0.0, %v1823
        %v1881 = vsub.f32 0.0, %v1827
        %v1882 = vsub.f32 0.0, %v1829
        %v1883 = vsub.f32 0.0, %v1831
        %v1884 = vsub.f32 0.0, %v1833
        %v1885 = vsub.f32 0.0, %v1837
        %v1886 = vsub.f32 0.0, %v1839
        %v1887 = vsub.f32 0.0, %v1841
        %v1888 = vsub.f32 0.0, %v1843
        %v1889 = vsub.f32 0.0, %v1847
        %v1890 = vsub.f32 0.0, %v1849
        %v1891 = vsub.f32 0.0, %v1851
        %v1892 = vsub.f32 0.0, %v1853
        %v1893 = vsub.f32 0.0, %v1857
        %v1894 = vsub.f32 0.0, %v1859
        %v1895 = vsub.f32 0.0, %v1861
        %v1896 = vsub.f32 0.0, %v1863
        %v1897 = vmul.f32 %v1865, 1.442695
        %v1898 = vpow.pop %v1897
        %v1899 = vmul.f32 %v1866, 1.442695
        %v1900 = vpow.pop %v1899
        %v1901 = vmul.f32 %v1867, 1.442695
        %v1902 = vpow.pop %v1901
        %v1903 = vmul.f32 %v1868, 1.442695
        %v1904 = vpow.pop %v1903
        %v1905 = vmul.f32 %v1869, 1.442695
        %v1906 = vpow.pop %v1905
        %v1907 = vmul.f32 %v1870, 1.442695
        %v1908 = vpow.pop %v1907
        %v1909 = vmul.f32 %v1871, 1.442695
        %v1910 = vpow.pop %v1909
        %v1911 = vmul.f32 %v1872, 1.442695
        %v1912 = vpow.pop %v1911
        %v1913 = vmul.f32 %v1873, 1.442695
        %v1914 = vpow.pop %v1913
        %v1915 = vmul.f32 %v1874, 1.442695
        %v1916 = vpow.pop %v1915
        %v1917 = vmul.f32 %v1875, 1.442695
        %v1918 = vpow.pop %v1917
        %v1919 = vmul.f32 %v1876, 1.442695
        %v1920 = vpow.pop %v1919
        %v1921 = vmul.f32 %v1877, 1.442695
        %v1922 = vpow.pop %v1921
        %v1923 = vmul.f32 %v1878, 1.442695
        %v1924 = vpow.pop %v1923
        %v1925 = vmul.f32 %v1879, 1.442695
        %v1926 = vpow.pop %v1925
        %v1927 = vmul.f32 %v1880, 1.442695
        %v1928 = vpow.pop %v1927
        %v1929 = vmul.f32 %v1881, 1.442695
        %v1930 = vpow.pop %v1929
        %v1931 = vmul.f32 %v1882, 1.442695
        %v1932 = vpow.pop %v1931
        %v1933 = vmul.f32 %v1883, 1.442695
        %v1934 = vpow.pop %v1933
        %v1935 = vmul.f32 %v1884, 1.442695
        %v1936 = vpow.pop %v1935
        %v1937 = vmul.f32 %v1885, 1.442695
        %v1938 = vpow.pop %v1937
        %v1939 = vmul.f32 %v1886, 1.442695
        %v1940 = vpow.pop %v1939
        %v1941 = vmul.f32 %v1887, 1.442695
        %v1942 = vpow.pop %v1941
        %v1943 = vmul.f32 %v1888, 1.442695
        %v1944 = vpow.pop %v1943
        %v1945 = vmul.f32 %v1889, 1.442695
        %v1946 = vpow.pop %v1945
        %v1947 = vmul.f32 %v1890, 1.442695
        %v1948 = vpow.pop %v1947
        %v1949 = vmul.f32 %v1891, 1.442695
        %v1950 = vpow.pop %v1949
        %v1951 = vmul.f32 %v1892, 1.442695
        %v1952 = vpow.pop %v1951
        %v1953 = vmul.f32 %v1893, 1.442695
        %v1954 = vpow.pop %v1953
        %v1955 = vmul.f32 %v1894, 1.442695
        %v1956 = vpow.pop %v1955
        %v1957 = vmul.f32 %v1895, 1.442695
        %v1958 = vpow.pop %v1957
        %v1959 = vmul.f32 %v1896, 1.442695
        %v1960 = vpow.pop %v1959
        %v1961 = vadd.f32 %v1898, 1.0
        %v1962 = vadd.f32 %v1900, 1.0
        %v1963 = vadd.f32 %v1902, 1.0
        %v1964 = vadd.f32 %v1904, 1.0
        %v1965 = vadd.f32 %v1906, 1.0
        %v1966 = vadd.f32 %v1908, 1.0
        %v1967 = vadd.f32 %v1910, 1.0
        %v1968 = vadd.f32 %v1912, 1.0
        %v1969 = vadd.f32 %v1914, 1.0
        %v1970 = vadd.f32 %v1916, 1.0
        %v1971 = vadd.f32 %v1918, 1.0
        %v1972 = vadd.f32 %v1920, 1.0
        %v1973 = vadd.f32 %v1922, 1.0
        %v1974 = vadd.f32 %v1924, 1.0
        %v1975 = vadd.f32 %v1926, 1.0
        %v1976 = vadd.f32 %v1928, 1.0
        %v1977 = vadd.f32 %v1930, 1.0
        %v1978 = vadd.f32 %v1932, 1.0
        %v1979 = vadd.f32 %v1934, 1.0
        %v1980 = vadd.f32 %v1936, 1.0
        %v1981 = vadd.f32 %v1938, 1.0
        %v1982 = vadd.f32 %v1940, 1.0
        %v1983 = vadd.f32 %v1942, 1.0
        %v1984 = vadd.f32 %v1944, 1.0
        %v1985 = vadd.f32 %v1946, 1.0
        %v1986 = vadd.f32 %v1948, 1.0
        %v1987 = vadd.f32 %v1950, 1.0
        %v1988 = vadd.f32 %v1952, 1.0
        %v1989 = vadd.f32 %v1954, 1.0
        %v1990 = vadd.f32 %v1956, 1.0
        %v1991 = vadd.f32 %v1958, 1.0
        %v1992 = vadd.f32 %v1960, 1.0
        %v1993 = vrcp.pop %v1961
        %v1994 = vrcp.pop %v1962
        %v1995 = vrcp.pop %v1963
        %v1996 = vrcp.pop %v1964
        %v1997 = vrcp.pop %v1965
        %v1998 = vrcp.pop %v1966
        %v1999 = vrcp.pop %v1967
        %v2000 = vrcp.pop %v1968
        %v2001 = vrcp.pop %v1969
        %v2002 = vrcp.pop %v1970
        %v2003 = vrcp.pop %v1971
        %v2004 = vrcp.pop %v1972
        %v2005 = vrcp.pop %v1973
        %v2006 = vrcp.pop %v1974
        %v2007 = vrcp.pop %v1975
        %v2008 = vrcp.pop %v1976
        %v2009 = vrcp.pop %v1977
        %v2010 = vrcp.pop %v1978
        %v2011 = vrcp.pop %v1979
        %v2012 = vrcp.pop %v1980
        %v2013 = vrcp.pop %v1981
        %v2014 = vrcp.pop %v1982
        %v2015 = vrcp.pop %v1983
        %v2016 = vrcp.pop %v1984
        %v2017 = vrcp.pop %v1985
        %v2018 = vrcp.pop %v1986
        %v2019 = vrcp.pop %v1987
        %v2020 = vrcp.pop %v1988
        %v2021 = vrcp.pop %v1989
        %v2022 = vrcp.pop %v1990
        %v2023 = vrcp.pop %v1991
        %v2024 = vrcp.pop %v1992
        %v2025 = vmul.f32 %v1707, %v1993
        %v2026 = vmul.f32 %v1709, %v1994
        %v2027 = vmul.f32 %v1711, %v1995
        %v2028 = vmul.f32 %v1713, %v1996
        %v2029 = vmul.f32 %v1717, %v1997
        %v2030 = vmul.f32 %v1719, %v1998
        %v2031 = vmul.f32 %v1721, %v1999
        %v2032 = vmul.f32 %v1723, %v2000
        %v2033 = vmul.f32 %v1727, %v2001
        %v2034 = vmul.f32 %v1729, %v2002
        %v2035 = vmul.f32 %v1731, %v2003
        %v2036 = vmul.f32 %v1733, %v2004
        %v2037 = vmul.f32 %v1737, %v2005
        %v2038 = vmul.f32 %v1739, %v2006
        %v2039 = vmul.f32 %v1741, %v2007
        %v2040 = vmul.f32 %v1743, %v2008
        %v2041 = vmul.f32 %v1747, %v2009
        %v2042 = vmul.f32 %v1749, %v2010
        %v2043 = vmul.f32 %v1751, %v2011
        %v2044 = vmul.f32 %v1753, %v2012
        %v2045 = vmul.f32 %v1757, %v2013
        %v2046 = vmul.f32 %v1759, %v2014
        %v2047 = vmul.f32 %v1761, %v2015
        %v2048 = vmul.f32 %v1763, %v2016
        %v2049 = vmul.f32 %v1767, %v2017
        %v2050 = vmul.f32 %v1769, %v2018
        %v2051 = vmul.f32 %v1771, %v2019
        %v2052 = vmul.f32 %v1773, %v2020
        %v2053 = vmul.f32 %v1777, %v2021
        %v2054 = vmul.f32 %v1779, %v2022
        %v2055 = vmul.f32 %v1781, %v2023
        %v2056 = vmul.f32 %v1783, %v2024
        %v2057 = vpack.c.bf16 %v2027, %v2025
        %v2058 = vpack.c.bf16 %v2028, %v2026
        %v2059 = vpack.c.bf16 %v2031, %v2029
        %v2060 = vpack.c.bf16 %v2032, %v2030
        %v2061 = vpack.c.bf16 %v2035, %v2033
        %v2062 = vpack.c.bf16 %v2036, %v2034
        %v2063 = vpack.c.bf16 %v2039, %v2037
        %v2064 = vpack.c.bf16 %v2040, %v2038
        %v2065 = vpack.c.bf16 %v2043, %v2041
        %v2066 = vpack.c.bf16 %v2044, %v2042
        %v2067 = vpack.c.bf16 %v2047, %v2045
        %v2068 = vpack.c.bf16 %v2048, %v2046
        %v2069 = vpack.c.bf16 %v2051, %v2049
        %v2070 = vpack.c.bf16 %v2052, %v2050
        %v2071 = vpack.c.bf16 %v2055, %v2053
        %v2072 = vpack.c.bf16 %v2056, %v2054
        %v2073 = vld [vmem:[%s3] sm:$0xf]
        %v2074 = vld [vmem:[%s3 + $0x4] sm:$0xf]
        %v2075 = vld [vmem:[%s3 + $0x8] sm:$0xf]
        %v2076 = vld [vmem:[%s3 + $0xc] sm:$0xf]
        %v2077 = vld [vmem:[%s3 + $0x10] sm:$0xf]
        %v2078 = vld [vmem:[%s3 + $0x14] sm:$0xf]
        %v2079 = vld [vmem:[%s3 + $0x18] sm:$0xf]
        %v2080 = vld [vmem:[%s3 + $0x1c] sm:$0xf]
        %v2081 = vld [vmem:[%s4] sm:$0xff]
        %v2082 = vld [vmem:[%s4 + $0x8] sm:$0xff]
        %v2083 = vld [vmem:[%s4 + $0x10] sm:$0xff]
        %v2084 = vld [vmem:[%s4 + $0x18] sm:$0xff]
        %v2085 = vld [vmem:[%s4 + $0x20] sm:$0xff]
        %v2086 = vld [vmem:[%s4 + $0x28] sm:$0xff]
        %v2087 = vld [vmem:[%s4 + $0x30] sm:$0xff]
        %v2088 = vld [vmem:[%s4 + $0x38] sm:$0xff]
        %2090 = vset.pattern.permute.xlu0 0
        %2091 = vperm.xlu0 %2090, %v2081
        %v2092 = vpop.permute.xlu0 %2091
        %2095 = vset.pattern.permute.xlu0 0
        %2096 = vperm.xlu0 %2095, %v2082
        %v2097 = vpop.permute.xlu0 %2096
        %2100 = vset.pattern.permute.xlu0 0
        %2101 = vperm.xlu0 %2100, %v2083
        %v2102 = vpop.permute.xlu0 %2101
        %2105 = vset.pattern.permute.xlu0 0
        %2106 = vperm.xlu0 %2105, %v2084
        %v2107 = vpop.permute.xlu0 %2106
        %2110 = vset.pattern.permute.xlu0 0
        %2111 = vperm.xlu0 %2110, %v2085
        %v2112 = vpop.permute.xlu0 %2111
        %2115 = vset.pattern.permute.xlu0 0
        %2116 = vperm.xlu0 %2115, %v2086
        %v2117 = vpop.permute.xlu0 %2116
        %2120 = vset.pattern.permute.xlu0 0
        %2121 = vperm.xlu0 %2120, %v2087
        %v2122 = vpop.permute.xlu0 %2121
        %2125 = vset.pattern.permute.xlu0 0
        %2126 = vperm.xlu0 %2125, %v2088
        %v2127 = vpop.permute.xlu0 %2126
        %v2137 = vunpack.c.l.b16 %v2073
        %v2138 = vunpack.c.l.b16 %v2074
        %v2139 = vunpack.c.l.b16 %v2075
        %v2140 = vunpack.c.l.b16 %v2076
        %v2141 = vunpack.c.l.b16 %v2077
        %v2142 = vunpack.c.l.b16 %v2078
        %v2143 = vunpack.c.l.b16 %v2079
        %v2144 = vunpack.c.l.b16 %v2080
        %v2145 = vpack.c.b16 %v2138, %v2137
        %v2146 = vpack.c.b16 %v2140, %v2139
        %v2147 = vpack.c.b16 %v2142, %v2141
        %v2148 = vpack.c.b16 %v2144, %v2143
        %2153 = vmatprep.subr.bf16.mxu0 %v2058
        %2154 = vmatpush1.bf16.msra.mxu0 %v2057
        %2155 = vmatprep.subr.bf16.mxu0 %v2060
        %2156 = vmatpush1.bf16.msra.mxu0 %v2059
        %2157 = vmatprep.subr.bf16.mxu0 %v2062
        %2158 = vmatpush1.bf16.msra.mxu0 %v2061
        %2159 = vmatprep.subr.bf16.mxu0 %v2064
        %2160 = vmatpush1.bf16.msra.mxu0 %v2063
        %2161 = vmatprep.subr.bf16.mxu0 %v2066
        %2162 = vmatpush1.bf16.msra.mxu0 %v2065
        %2163 = vmatprep.subr.bf16.mxu0 %v2068
        %2164 = vmatpush1.bf16.msra.mxu0 %v2067
        %2165 = vmatprep.subr.bf16.mxu0 %v2070
        %2166 = vmatpush1.bf16.msra.mxu0 %v2069
        %2167 = vmatprep.subr.bf16.mxu0 %v2072
        %2168 = vmatpush1.bf16.msra.mxu0 %v2071
        %2169 = vmatprep.subr.bf16.mxu0 0
        %2170 = vmatpush1.bf16.msra.mxu0 0
        %2171 = vmatprep.subr.bf16.mxu0 0
        %2172 = vmatpush1.bf16.msra.mxu0 0
        %2173 = vmatprep.subr.bf16.mxu0 0
        %2174 = vmatpush1.bf16.msra.mxu0 0
        %2175 = vmatprep.subr.bf16.mxu0 0
        %2176 = vmatpush1.bf16.msra.mxu0 0
        %2177 = vmatprep.subr.bf16.mxu0 0
        %2178 = vmatpush1.bf16.msra.mxu0 0
        %2179 = vmatprep.subr.bf16.mxu0 0
        %2180 = vmatpush1.bf16.msra.mxu0 0
        %2181 = vmatprep.subr.bf16.mxu0 0
        %2182 = vmatpush1.bf16.msra.mxu0 0
        %2183 = vmatprep.subr.bf16.mxu0 0
        %2184 = vmatpush1.bf16.msra.mxu0 0
        %2185 = vmatprep.mubr.bf16.mxu0 0
        %2186 = vmatmul.mubr.bf16.gmra.mrb[0].mxu0 %v2145
        %v2187 = vpop.f32.mrb[0].mxu0
        %v2188 = vadd.f32 %v2092, %v2187
        %v2189 = vpop.f32.mrb[0].mxu0
        %v2190 = vadd.f32 %v2092, %v2189
        %v2191 = vpop.f32.mrb[0].mxu0
        %v2192 = vadd.f32 %v2097, %v2191
        %v2193 = vpop.f32.mrb[0].mxu0
        %v2194 = vadd.f32 %v2097, %v2193
        %2195 = vmatprep.mubr.bf16.mxu0 0
        %2196 = vmatmul.mubr.bf16.gmra.mrb[0].mxu0 %v2146
        %v2197 = vpop.f32.mrb[0].mxu0
        %v2198 = vadd.f32 %v2102, %v2197
        %v2199 = vpop.f32.mrb[0].mxu0
        %v2200 = vadd.f32 %v2102, %v2199
        %v2201 = vpop.f32.mrb[0].mxu0
        %v2202 = vadd.f32 %v2107, %v2201
        %v2203 = vpop.f32.mrb[0].mxu0
        %v2204 = vadd.f32 %v2107, %v2203
        %2205 = vmatprep.mubr.bf16.mxu0 0
        %2206 = vmatmul.mubr.bf16.gmra.mrb[0].mxu0 %v2147
        %v2207 = vpop.f32.mrb[0].mxu0
        %v2208 = vadd.f32 %v2112, %v2207
        %v2209 = vpop.f32.mrb[0].mxu0
        %v2210 = vadd.f32 %v2112, %v2209
        %v2211 = vpop.f32.mrb[0].mxu0
        %v2212 = vadd.f32 %v2117, %v2211
        %v2213 = vpop.f32.mrb[0].mxu0
        %v2214 = vadd.f32 %v2117, %v2213
        %2215 = vmatprep.mubr.bf16.mxu0 0
        %2216 = vmatmul.mubr.bf16.gmra.mrb[0].mxu0 %v2148
        %v2217 = vpop.f32.mrb[0].mxu0
        %v2218 = vadd.f32 %v2122, %v2217
        %v2219 = vpop.f32.mrb[0].mxu0
        %v2220 = vadd.f32 %v2122, %v2219
        %v2221 = vpop.f32.mrb[0].mxu0
        %v2222 = vadd.f32 %v2127, %v2221
        %v2223 = vpop.f32.mrb[0].mxu0
        %v2224 = vadd.f32 %v2127, %v2223
        %2225 = vdwg.mxu0
        %v2226 = vpack.c.bf16 %v2192, %v2188
        %v2227 = vpack.c.bf16 %v2194, %v2190
        %v2228 = vpack.c.bf16 %v2202, %v2198
        %v2229 = vpack.c.bf16 %v2204, %v2200
        %v2230 = vpack.c.bf16 %v2212, %v2208
        %v2231 = vpack.c.bf16 %v2214, %v2210
        %v2232 = vpack.c.bf16 %v2222, %v2218
        %v2233 = vpack.c.bf16 %v2224, %v2220
        %v2242 = vunpack.c.l.b16 %v2226
        %v2243 = vunpack.c.l.b16 %v2227
        %v2244 = vunpack.c.h.b16 %v2226
        %v2245 = vunpack.c.h.b16 %v2227
        %v2246 = vunpack.c.l.b16 %v2228
        %v2247 = vunpack.c.l.b16 %v2229
        %v2248 = vunpack.c.h.b16 %v2228
        %v2249 = vunpack.c.h.b16 %v2229
        %v2250 = vunpack.c.l.b16 %v2230
        %v2251 = vunpack.c.l.b16 %v2231
        %v2252 = vunpack.c.h.b16 %v2230
        %v2253 = vunpack.c.h.b16 %v2231
        %v2254 = vunpack.c.l.b16 %v2232
        %v2255 = vunpack.c.l.b16 %v2233
        %v2256 = vunpack.c.h.b16 %v2232
        %v2257 = vunpack.c.h.b16 %v2233
        %v2258 = vpack.c.b16 %v2243, %v2242
        %v2259 = vpack.c.b16 %v2245, %v2244
        %v2260 = vpack.c.b16 %v2247, %v2246
        %v2261 = vpack.c.b16 %v2249, %v2248
        %v2262 = vpack.c.b16 %v2251, %v2250
        %v2263 = vpack.c.b16 %v2253, %v2252
        %v2264 = vpack.c.b16 %v2255, %v2254
        %v2265 = vpack.c.b16 %v2257, %v2256
        %s2274 = scalar_lea.vmem %s245, 64 [#allocation2]
        %2275 = vst [vmem:[%s2274] sm:$0xff] %v2258
        %2276 = vst [vmem:[%s2274 + $0x8] sm:$0xff] %v2259
        %2277 = vst [vmem:[%s2274 + $0x10] sm:$0xff] %v2260
        %2278 = vst [vmem:[%s2274 + $0x18] sm:$0xff] %v2261
        %2279 = vst [vmem:[%s2274 + $0x20] sm:$0xff] %v2262
        %2280 = vst [vmem:[%s2274 + $0x28] sm:$0xff] %v2263
        %2281 = vst [vmem:[%s2274 + $0x30] sm:$0xff] %v2264
        %2282 = vst [vmem:[%s2274 + $0x38] sm:$0xff] %v2265
        %s2283 = sand.u32 %s153, 1
        %s2284 = scalar_lea.sflag [#allocation3], %s2283
        %s2285 = sand.u32 %s153, 1
        %s2286 = smul.addr %s2285, 128
        %s2287 = scalar_lea.vmem [#allocation2], %s2286
        // Predicated region
        $region41: #{output_layer_forward.1} parent=39 // pred_check
          %p2288 = pneg %p163
        $region42: #{output_layer_forward.1} parent=39 // pred_check_branch
          %2290 = sbr.rel (%p2288) target = $region44
        $region43: #{output_layer_forward.1} parent=39 // pred_region
          #allocation5 [shape = 'u32[6]{0}', space=smem, size = 0x18, scoped, tag = 'DMA stride descriptor']
          %s2291 = smul.u32 2, %s24
          %s2293 = ssub.s32 2048, 2048
          %2294 = vsyncadd %s2284, %s2293
          %s2295 = smul.addr %s23, 16
          %s2296 = sadd.s32 %s2291, %s2295
          %s2297 = smul.addr %s2296, 64
          %s2298 = scalar_lea.hbm %s5, %s2297
          %s2300 = sshll.u32 1, 14
          %s2301 = sxor.u32 4294967295, %s2300
          %s2304 = sshll.u32 7, 18
          %s2305 = sxor.u32 4294967295, %s2304
          %s2306 = sand.u32 0, %s2305
          %s2308 = sor.u32 %s2306, 0
          %s2310 = sshll.u32 3, 24
          %s2311 = sxor.u32 4294967295, %s2310
          %s2312 = sand.u32 %s2308, %s2311
          %s2314 = sor.u32 %s2312, 0
          %s2315 = sshll.u32 %s2287, 4
          %s2316 = int_to_ptr.vmem [resolvable:$true] %s2315
          %2322 = sst [smem:[#allocation5]] 1024
          %s2323 = scalar_lea.smem [#allocation5], 1
          %2324 = sst [smem:[%s2323]] 2048
          %s2325 = scalar_lea.smem [#allocation5], 2
          %2326 = sst [smem:[%s2325]] 8
          %s2327 = scalar_lea.smem [#allocation5], 3
          %2328 = sst [smem:[%s2327]] 128
          %s2329 = scalar_lea.smem [#allocation5], 4
          %2330 = sst [smem:[%s2329]] 128
          %s2331 = scalar_lea.smem [#allocation5], 5
          %2332 = sst [smem:[%s2331]] 8
          %2334 = dma.general %s2316, 2048, %s2298, %s2284, [#allocation4], [#allocation5], %s2314, 0
        $region44: #{output_layer_forward.1} parent=39 // pred_fallthru
          _
      $region40: #{output_layer_forward.1} parent=5 // pred_fallthru
        _
      %p2335 = scmp.le.s32.totalorder 2, %s14
      // Predicated region
      $region45: #{output_layer_forward.1} parent=5 // pred_check
        %p2336 = pneg %p2335
      $region46: #{output_layer_forward.1} parent=5 // pred_check_branch
        %2338 = sbr.rel (%p2336) target = $region48
      $region47: #{output_layer_forward.1} parent=5 // pred_region
        %s2339 = ssub.s32 %s14, 2
        // Predicated region
        $region49: #{output_layer_forward.1} parent=47 // pred_check
          %p2340 = pneg %p169
        $region50: #{output_layer_forward.1} parent=47 // pred_check_branch
          %2342 = sbr.rel (%p2340) target = $region52
        $region51: #{output_layer_forward.1} parent=47 // pred_region
          %s2343 = sand.u32 %s154, 1
          %s2344 = scalar_lea.sflag [#allocation3], %s2343
          %s2345 = sand.u32 %s154, 1
          %s2346 = smul.addr %s2345, 128
          %s2347 = scalar_lea.vmem [#allocation2], %s2346
          %2348 = dma.done %s2344, 2048
        $region52: #{output_layer_forward.1} parent=47 // pred_fallthru
          _
      $region48: #{output_layer_forward.1} parent=5 // pred_fallthru
        _
    $region6: #{output_layer_forward.1} parent=1 // loop_footer
      %s18 = sadd.s32 1, %s14
    $region7: #{output_layer_forward.1} parent=1 // loop_footer_branch
      %13 = sbr.rel target = $region3
    $region8: #{output_layer_forward.1} parent=1 // loop_exit
      _
    %2349 = vsyncpa [#allocation3], 1
    %s2350 = scalar_lea.sflag [#allocation3], 1
    %2351 = vsyncpa %s2350, 1

</llo_original>
